<compile_context>
chip_gen: v7x
topology: tpu7x:2x2x1
jax: 0.10.0
libtpu: 0.0.40
codegen_flags: <defaults>
</compile_context>

<pallas_src>
import functools

import jax
import jax.numpy as jnp
from jax.experimental import pallas as pl
from jax.experimental.pallas import tpu as pltpu


_VMEM_LIMIT = 32 * 1024 * 1024  # safe on v5e/v6e (128 MiB) and v7x (64 MiB)


def _row_tile(n, max_tile=512):
    """Largest row tile <= max_tile that evenly divides n (multiple of 8)."""
    if n <= max_tile:
        return n
    for t in range(max_tile, 7, -8):
        if n % t == 0:
            return t
    return n


# -----------------------------------------------------------------------------
# Fused attention block kernel:
#   q/k(/v) projection  ->  per-head SDPA  ->  output projection
#   ->  residual add  ->  LayerNorm
# Grid is over the batch dimension; weights stay VMEM-resident (block (0,0)).
# -----------------------------------------------------------------------------
def _attn_block_kernel(x_ref, pos_ref, kv_ref,
                       wa_ref, ba_ref, wb_ref, bb_ref,
                       wo_ref, bo_ref, g_ref, beta_ref,
                       o_ref, *, nheads, scale, mode, eps):
    _, sq, d = x_ref.shape
    _, sk, _ = kv_ref.shape
    dh = d // nheads

    x = x_ref[0]                                    # (Sq, D)  residual / base
    pos = pos_ref[0]                                # (Sq, D)
    kv = kv_ref[0]                                  # (Sk, D)

    xq = x + pos
    # fused projections: one (D, 2D) matmul for the shared-source pair
    a = jnp.dot(xq, wa_ref[...], preferred_element_type=jnp.float32) + ba_ref[...]
    b = jnp.dot(kv, wb_ref[...], preferred_element_type=jnp.float32) + bb_ref[...]

    if mode == "self":        # a = [Q | K] from x+pos, b = V from x
        q_arr, q_off = a, 0
        k_arr, k_off = a, d
        v_arr, v_off = b, 0
    else:                     # "cross": a = Q from x+pos, b = [K | V] from tgt
        q_arr, q_off = a, 0
        k_arr, k_off = b, 0
        v_arr, v_off = b, d

    wo = wo_ref[...]                                # (D, D), VMEM-resident
    attn_out = jnp.zeros((sq, d), jnp.float32)

    # Per-head SDPA, unrolled (static head count).  Scores keep Sk on lanes;
    # the contraction on dh uses dot_general directly (no explicit transpose).
    for h in range(nheads):
        lo = h * dh
        qh = q_arr[:, q_off + lo:q_off + lo + dh]   # (Sq, dh)
        kh = k_arr[:, k_off + lo:k_off + lo + dh]   # (Sk, dh)
        vh = v_arr[:, v_off + lo:v_off + lo + dh]   # (Sk, dh)

        s = jax.lax.dot_general(
            qh, kh, (((1,), (1,)), ((), ())),
            preferred_element_type=jnp.float32) * scale        # (Sq, Sk)
        s = s - jnp.max(s, axis=-1, keepdims=True)
        p = jnp.exp(s)
        p = p * pl.reciprocal(jnp.sum(p, axis=-1, keepdims=True), approx=True)
        oh = jnp.dot(p, vh, preferred_element_type=jnp.float32)  # (Sq, dh)
        # fold the output projection per head (avoids a concat)
        attn_out = attn_out + jnp.dot(
            oh, wo[lo:lo + dh, :], preferred_element_type=jnp.float32)

    y = x + attn_out + bo_ref[...]

    # LayerNorm epilogue
    mu = jnp.mean(y, axis=-1, keepdims=True)
    var = jnp.mean((y - mu) ** 2, axis=-1, keepdims=True)
    o_ref[0] = ((y - mu) * jax.lax.rsqrt(var + eps) * g_ref[...]
                + beta_ref[...]).astype(o_ref.dtype)


def fused_attn_block(x, pos, kv_src, wa, ba, wb, bb, wo, bo, gamma, beta,
                     *, nheads, mode, eps=1e-5):
    """x/pos: (B, Sq, D); kv_src: (B, Sk, D). Returns LN(x + MHA(...))."""
    bsz, sq, d = x.shape
    sk = kv_src.shape[1]
    da, db = wa.shape[1], wb.shape[1]
    scale = 1.0 / float(d // nheads) ** 0.5
    kernel = functools.partial(_attn_block_kernel, nheads=nheads, scale=scale,
                               mode=mode, eps=eps)
    return pl.pallas_call(
        kernel,
        out_shape=jax.ShapeDtypeStruct((bsz, sq, d), x.dtype),
        grid=(bsz,),
        in_specs=[
            pl.BlockSpec((1, sq, d), lambda i: (i, 0, 0)),
            pl.BlockSpec((1, sq, d), lambda i: (i, 0, 0)),
            pl.BlockSpec((1, sk, d), lambda i: (i, 0, 0)),
            pl.BlockSpec((d, da), lambda i: (0, 0)),
            pl.BlockSpec((1, da), lambda i: (0, 0)),
            pl.BlockSpec((d, db), lambda i: (0, 0)),
            pl.BlockSpec((1, db), lambda i: (0, 0)),
            pl.BlockSpec((d, d), lambda i: (0, 0)),
            pl.BlockSpec((1, d), lambda i: (0, 0)),
            pl.BlockSpec((1, d), lambda i: (0, 0)),
            pl.BlockSpec((1, d), lambda i: (0, 0)),
        ],
        out_specs=pl.BlockSpec((1, sq, d), lambda i: (i, 0, 0)),
        compiler_params=pltpu.CompilerParams(
            dimension_semantics=("parallel",),
            vmem_limit_bytes=_VMEM_LIMIT),
    )(x, pos, kv_src, wa, ba, wb, bb, wo, bo, gamma, beta)


# -----------------------------------------------------------------------------
# Fused FFN kernel: ReLU(x @ W1 + b1) @ W2 + b2, residual add, LayerNorm.
# Row-tiled grid, weights VMEM-resident across grid steps.
# -----------------------------------------------------------------------------
def _ffn_ln_kernel(x_ref, w1_ref, b1_ref, w2_ref, b2_ref, g_ref, beta_ref,
                   o_ref, *, eps):
    x = x_ref[...]                                                  # (TN, D)
    h = jnp.dot(x, w1_ref[...], preferred_element_type=jnp.float32) + b1_ref[...]
    h = jnp.maximum(h, 0.0)
    y = jnp.dot(h, w2_ref[...], preferred_element_type=jnp.float32) + b2_ref[...]
    y = x + y
    mu = jnp.mean(y, axis=-1, keepdims=True)
    var = jnp.mean((y - mu) ** 2, axis=-1, keepdims=True)
    o_ref[...] = ((y - mu) * jax.lax.rsqrt(var + eps) * g_ref[...]
                  + beta_ref[...]).astype(o_ref.dtype)


def fused_ffn_ln(x2d, w1, b1, w2, b2, gamma, beta, eps=1e-5):
    n, d = x2d.shape
    dff = w1.shape[1]
    tn = _row_tile(n)
    return pl.pallas_call(
        functools.partial(_ffn_ln_kernel, eps=eps),
        out_shape=jax.ShapeDtypeStruct((n, d), x2d.dtype),
        grid=(n // tn,),
        in_specs=[
            pl.BlockSpec((tn, d), lambda i: (i, 0)),
            pl.BlockSpec((d, dff), lambda i: (0, 0)),
            pl.BlockSpec((1, dff), lambda i: (0, 0)),
            pl.BlockSpec((dff, d), lambda i: (0, 0)),
            pl.BlockSpec((1, d), lambda i: (0, 0)),
            pl.BlockSpec((1, d), lambda i: (0, 0)),
            pl.BlockSpec((1, d), lambda i: (0, 0)),
        ],
        out_specs=pl.BlockSpec((tn, d), lambda i: (i, 0)),
        compiler_params=pltpu.CompilerParams(
            dimension_semantics=("parallel",),
            vmem_limit_bytes=_VMEM_LIMIT),
    )(x2d, w1, b1, w2, b2, gamma, beta)


# -----------------------------------------------------------------------------
# Standalone LayerNorm (final norm / intermediates), row-tiled.
# -----------------------------------------------------------------------------
def _ln_kernel(x_ref, g_ref, b_ref, o_ref, *, eps):
    x = x_ref[...]
    mu = jnp.mean(x, axis=-1, keepdims=True)
    var = jnp.mean((x - mu) ** 2, axis=-1, keepdims=True)
    o_ref[...] = ((x - mu) * jax.lax.rsqrt(var + eps) * g_ref[...]
                  + b_ref[...]).astype(o_ref.dtype)


def layernorm(x2d, gamma, beta, eps=1e-5):
    n, d = x2d.shape
    tn = _row_tile(n)
    return pl.pallas_call(
        functools.partial(_ln_kernel, eps=eps),
        out_shape=jax.ShapeDtypeStruct((n, d), x2d.dtype),
        grid=(n // tn,),
        in_specs=[
            pl.BlockSpec((tn, d), lambda i: (i, 0)),
            pl.BlockSpec((1, d), lambda i: (0, 0)),
            pl.BlockSpec((1, d), lambda i: (0, 0)),
        ],
        out_specs=pl.BlockSpec((tn, d), lambda i: (i, 0)),
        compiler_params=pltpu.CompilerParams(
            dimension_semantics=("parallel",),
            vmem_limit_bytes=_VMEM_LIMIT),
    )(x2d, gamma, beta)


# -----------------------------------------------------------------------------
# Decoder layer / stack (internal layout: (B, S, D))
# -----------------------------------------------------------------------------
def decoder_layer_fwd(x, tgt, pos, p, nheads):
    # self-attention (pos on Q/K) + residual + LN1
    x = fused_attn_block(x, pos, x,
                         p["self_wqk"], p["self_bqk"],
                         p["self_wv"], p["self_bv"],
                         p["self_wo"], p["self_bo"],
                         p["ln1_g"], p["ln1_b"],
                         nheads=nheads, mode="self")
    # cross-attention (Q from x+pos; K/V from tgt) + residual + LN2
    x = fused_attn_block(x, pos, tgt,
                         p["cross_wq"], p["cross_bq"],
                         p["cross_wkv"], p["cross_bkv"],
                         p["cross_wo"], p["cross_bo"],
                         p["ln2_g"], p["ln2_b"],
                         nheads=nheads, mode="cross")
    # FFN + residual + LN3
    b, s, d = x.shape
    y = fused_ffn_ln(x.reshape(b * s, d), p["w1"], p["b1"], p["w2"], p["b2"],
                     p["ln3_g"], p["ln3_b"])
    return y.reshape(b, s, d)


def transformer_decoder_fwd(memory, tgt, m_pos, layer_params, norm_params,
                            nheads, return_intermediate=False):
    """Mirrors TransformerDecoder.forward.  memory/tgt/m_pos: (S, B, D)."""
    s, b, d = memory.shape
    # One layout conversion in/out; all kernels run on (B, S, D).
    x = jnp.transpose(memory, (1, 0, 2))
    tgt_b = jnp.transpose(tgt, (1, 0, 2))
    pos_b = (jnp.zeros_like(x) if m_pos is None
             else jnp.transpose(m_pos, (1, 0, 2)))

    def maybe_norm(y):
        if norm_params is None:
            # PyTorch would crash here; safely pass through instead.
            return y
        return layernorm(y.reshape(b * s, d),
                         norm_params[0], norm_params[1]).reshape(b, s, d)

    intermediate = []
    for p in layer_params:
        x = decoder_layer_fwd(x, tgt_b, pos_b, p, nheads)
        if return_intermediate:
            intermediate.append(maybe_norm(x))

    if norm_params is not None:
        x = maybe_norm(x)
        if return_intermediate:
            intermediate.pop()
            intermediate.append(x)

    if return_intermediate:
        return jnp.stack([jnp.transpose(t, (1, 0, 2)) for t in intermediate])
    return jnp.transpose(x, (1, 0, 2))


# -----------------------------------------------------------------------------
# Deterministic parameter init (weights stored pre-fused / pre-reshaped)
# -----------------------------------------------------------------------------
def init_layer_params(key, d, dff):
    ks = jax.random.split(key, 8)
    sc = 1.0 / d ** 0.5

    def nrm(k, shape, s):
        return jax.random.normal(k, shape, jnp.float32) * s

    return {
        # self-attn: [Wq|Wk] fused (same source: x+pos), Wv separate (source: x)
        "self_wqk": nrm(ks[0], (d, 2 * d), sc),
        "self_bqk": jnp.zeros((1, 2 * d), jnp.float32),
        "self_wv": nrm(ks[1], (d, d), sc),
        "self_bv": jnp.zeros((1, d), jnp.float32),
        "self_wo": nrm(ks[2], (d, d), sc),
        "self_bo": jnp.zeros((1, d), jnp.float32),
        # cross-attn: Wq separate (source: x+pos), [Wk|Wv] fused (source: tgt)
        "cross_wq": nrm(ks[3], (d, d), sc),
        "cross_bq": jnp.zeros((1, d), jnp.float32),
        "cross_wkv": nrm(ks[4], (d, 2 * d), sc),
        "cross_bkv": jnp.zeros((1, 2 * d), jnp.float32),
        "cross_wo": nrm(ks[5], (d, d), sc),
        "cross_bo": jnp.zeros((1, d), jnp.float32),
        # FFN
        "w1": nrm(ks[6], (d, dff), sc),
        "b1": jnp.zeros((1, dff), jnp.float32),
        "w2": nrm(ks[7], (dff, d), 1.0 / dff ** 0.5),
        "b2": jnp.zeros((1, d), jnp.float32),
        # LayerNorms
        "ln1_g": jnp.ones((1, d), jnp.float32), "ln1_b": jnp.zeros((1, d), jnp.float32),
        "ln2_g": jnp.ones((1, d), jnp.float32), "ln2_b": jnp.zeros((1, d), jnp.float32),
        "ln3_g": jnp.ones((1, d), jnp.float32), "ln3_b": jnp.zeros((1, d), jnp.float32),
    }


# -----------------------------------------------------------------------------
if __name__ == "__main__":
    # small shapes: seq=8, batch=2, d_model=32, heads=4, ffn=64, layers=2
    S_MEM, S_TGT, B, D, H, DFF, NLAYERS = 8, 8, 2, 32, 4, 64, 2

    root = jax.random.PRNGKey(0)
    k_mem, k_tgt, k_pos, k_params = jax.random.split(root, 4)

    memory = jax.random.normal(k_mem, (S_MEM, B, D), jnp.float32)
    tgt = jax.random.normal(k_tgt, (S_TGT, B, D), jnp.float32)
    m_pos = jax.random.normal(k_pos, (S_MEM, B, D), jnp.float32)

    layer_keys = jax.random.split(k_params, NLAYERS)
    layer_params = [init_layer_params(k, D, DFF) for k in layer_keys]
    norm_params = (jnp.ones((1, D), jnp.float32), jnp.zeros((1, D), jnp.float32))

    out = transformer_decoder_fwd(memory, tgt, m_pos, layer_params, norm_params,
                                  nheads=H, return_intermediate=False)
    out = jax.block_until_ready(out)
    assert out.shape == (S_MEM, B, D)
    assert bool(jnp.all(jnp.isfinite(out)))
    print("KERNEL_OK")
</pallas_src>

<mosaic_0001>
module attributes {stable_mosaic.version = 11 : i64} {
  func.func @_attn_block_kernel(%arg0: i32, %arg1: memref<1x8x32xf32, #tpu.memory_space<vmem>>, %arg2: memref<1x8x32xf32, #tpu.memory_space<vmem>>, %arg3: memref<1x8x32xf32, #tpu.memory_space<vmem>>, %arg4: memref<32x64xf32, #tpu.memory_space<vmem>>, %arg5: memref<1x64xf32, #tpu.memory_space<vmem>>, %arg6: memref<32x32xf32, #tpu.memory_space<vmem>>, %arg7: memref<1x32xf32, #tpu.memory_space<vmem>>, %arg8: memref<32x32xf32, #tpu.memory_space<vmem>>, %arg9: memref<1x32xf32, #tpu.memory_space<vmem>>, %arg10: memref<1x32xf32, #tpu.memory_space<vmem>>, %arg11: memref<1x32xf32, #tpu.memory_space<vmem>>, %arg12: memref<1x8x32xf32, #tpu.memory_space<vmem>>) attributes {dimension_semantics = [#tpu.dimension_semantics<parallel>], iteration_bounds = array<i64: 2>, scalar_prefetch = 0 : i64, scratch_operands = 0 : i64, tpu.core_type = #tpu.core_type<tc>, window_params = [{transform_indices = @transform_0, window_bounds = array<i64: 1, 8, 32>}, {transform_indices = @transform_1, window_bounds = array<i64: 1, 8, 32>}, {transform_indices = @transform_2, window_bounds = array<i64: 1, 8, 32>}, {pipeline_mode = #tpu.pipeline_mode<synchronous>, transform_indices = @transform_3, window_bounds = array<i64: 32, 64>}, {pipeline_mode = #tpu.pipeline_mode<synchronous>, transform_indices = @transform_4, window_bounds = array<i64: 1, 64>}, {pipeline_mode = #tpu.pipeline_mode<synchronous>, transform_indices = @transform_5, window_bounds = array<i64: 32, 32>}, {pipeline_mode = #tpu.pipeline_mode<synchronous>, transform_indices = @transform_6, window_bounds = array<i64: 1, 32>}, {pipeline_mode = #tpu.pipeline_mode<synchronous>, transform_indices = @transform_7, window_bounds = array<i64: 32, 32>}, {pipeline_mode = #tpu.pipeline_mode<synchronous>, transform_indices = @transform_8, window_bounds = array<i64: 1, 32>}, {pipeline_mode = #tpu.pipeline_mode<synchronous>, transform_indices = @transform_9, window_bounds = array<i64: 1, 32>}, {pipeline_mode = #tpu.pipeline_mode<synchronous>, transform_indices = @transform_10, window_bounds = array<i64: 1, 32>}, {transform_indices = @transform_11, window_bounds = array<i64: 1, 8, 32>}]} {
    %c0 = arith.constant 0 : index
    %c0_0 = arith.constant 0 : index
    %c0_1 = arith.constant 0 : index
    %0 = vector.load %arg1[%c0, %c0_0, %c0_1] : memref<1x8x32xf32, #tpu.memory_space<vmem>>, vector<1x8x32xf32>
    %1 = vector.shape_cast %0 : vector<1x8x32xf32> to vector<8x32xf32>
    %c0_2 = arith.constant 0 : index
    %c0_3 = arith.constant 0 : index
    %c0_4 = arith.constant 0 : index
    %2 = vector.load %arg2[%c0_2, %c0_3, %c0_4] : memref<1x8x32xf32, #tpu.memory_space<vmem>>, vector<1x8x32xf32>
    %3 = vector.shape_cast %2 : vector<1x8x32xf32> to vector<8x32xf32>
    %c0_5 = arith.constant 0 : index
    %c0_6 = arith.constant 0 : index
    %c0_7 = arith.constant 0 : index
    %4 = vector.load %arg3[%c0_5, %c0_6, %c0_7] : memref<1x8x32xf32, #tpu.memory_space<vmem>>, vector<1x8x32xf32>
    %5 = vector.shape_cast %4 : vector<1x8x32xf32> to vector<8x32xf32>
    %6 = arith.addf %1, %3 : vector<8x32xf32>
    %c0_8 = arith.constant 0 : index
    %c0_9 = arith.constant 0 : index
    %7 = vector.load %arg4[%c0_8, %c0_9] : memref<32x64xf32, #tpu.memory_space<vmem>>, vector<32x64xf32>
    %cst = arith.constant dense<0.000000e+00> : vector<8x64xf32>
    %8 = tpu.matmul %6, %7, %cst {dimension_numbers = #tpu.dot_dimension_numbers<[1], [0], [0], [1], [0, 0, 1, 1], [], []>} : vector<8x32xf32>, vector<32x64xf32>, vector<8x64xf32> -> vector<8x64xf32>
    %c0_10 = arith.constant 0 : index
    %c0_11 = arith.constant 0 : index
    %9 = vector.load %arg5[%c0_10, %c0_11] : memref<1x64xf32, #tpu.memory_space<vmem>>, vector<1x64xf32>
    %10 = vector.broadcast %9 : vector<1x64xf32> to vector<8x64xf32>
    %11 = arith.addf %8, %10 : vector<8x64xf32>
    %c0_12 = arith.constant 0 : index
    %c0_13 = arith.constant 0 : index
    %12 = vector.load %arg6[%c0_12, %c0_13] : memref<32x32xf32, #tpu.memory_space<vmem>>, vector<32x32xf32>
    %cst_14 = arith.constant dense<0.000000e+00> : vector<8x32xf32>
    %13 = tpu.matmul %5, %12, %cst_14 {dimension_numbers = #tpu.dot_dimension_numbers<[1], [0], [0], [1], [0, 0, 1, 1], [], []>} : vector<8x32xf32>, vector<32x32xf32>, vector<8x32xf32> -> vector<8x32xf32>
    %c0_15 = arith.constant 0 : index
    %c0_16 = arith.constant 0 : index
    %14 = vector.load %arg7[%c0_15, %c0_16] : memref<1x32xf32, #tpu.memory_space<vmem>>, vector<1x32xf32>
    %15 = vector.broadcast %14 : vector<1x32xf32> to vector<8x32xf32>
    %16 = arith.addf %13, %15 : vector<8x32xf32>
    %c0_17 = arith.constant 0 : index
    %c0_18 = arith.constant 0 : index
    %17 = vector.load %arg8[%c0_17, %c0_18] : memref<32x32xf32, #tpu.memory_space<vmem>>, vector<32x32xf32>
    %cst_19 = arith.constant 0.000000e+00 : f32
    %18 = vector.broadcast %cst_19 : f32 to vector<8x32xf32>
    %19 = vector.extract_strided_slice %11 {offsets = [0, 0], sizes = [8, 8], strides = [1, 1]} : vector<8x64xf32> to vector<8x8xf32>
    %20 = vector.extract_strided_slice %11 {offsets = [0, 32], sizes = [8, 8], strides = [1, 1]} : vector<8x64xf32> to vector<8x8xf32>
    %21 = vector.extract_strided_slice %16 {offsets = [0, 0], sizes = [8, 8], strides = [1, 1]} : vector<8x32xf32> to vector<8x8xf32>
    %cst_20 = arith.constant dense<0.000000e+00> : vector<8x8xf32>
    %22 = tpu.matmul %19, %20, %cst_20 {dimension_numbers = #tpu.dot_dimension_numbers<[1], [1], [0], [0], [0, 0, 1, 0], [], []>} : vector<8x8xf32>, vector<8x8xf32>, vector<8x8xf32> -> vector<8x8xf32>
    %cst_21 = arith.constant 0.353553385 : f32
    %23 = vector.broadcast %cst_21 : f32 to vector<8x8xf32>
    %24 = arith.mulf %22, %23 : vector<8x8xf32>
    %cst_22 = arith.constant dense<0xFF800000> : vector<8xf32>
    %25 = vector.multi_reduction <maximumf>, %24, %cst_22 [1] : vector<8x8xf32> to vector<8xf32>
    %26 = vector.shape_cast %25 : vector<8xf32> to vector<8x1xf32>
    %27 = vector.broadcast %26 : vector<8x1xf32> to vector<8x8xf32>
    %28 = arith.subf %24, %27 : vector<8x8xf32>
    %29 = math.exp %28 : vector<8x8xf32>
    %cst_23 = arith.constant dense<0.000000e+00> : vector<8xf32>
    %30 = vector.multi_reduction <add>, %29, %cst_23 [1] : vector<8x8xf32> to vector<8xf32>
    %31 = vector.shape_cast %30 : vector<8xf32> to vector<8x1xf32>
    %32 = tpu.reciprocal %31 {approx = true} : vector<8x1xf32> -> vector<8x1xf32>
    %33 = vector.broadcast %32 : vector<8x1xf32> to vector<8x8xf32>
    %34 = arith.mulf %29, %33 : vector<8x8xf32>
    %cst_24 = arith.constant dense<0.000000e+00> : vector<8x8xf32>
    %35 = tpu.matmul %34, %21, %cst_24 {dimension_numbers = #tpu.dot_dimension_numbers<[1], [0], [0], [1], [0, 0, 1, 1], [], []>} : vector<8x8xf32>, vector<8x8xf32>, vector<8x8xf32> -> vector<8x8xf32>
    %36 = vector.extract_strided_slice %17 {offsets = [0, 0], sizes = [8, 32], strides = [1, 1]} : vector<32x32xf32> to vector<8x32xf32>
    %cst_25 = arith.constant dense<0.000000e+00> : vector<8x32xf32>
    %37 = tpu.matmul %35, %36, %cst_25 {dimension_numbers = #tpu.dot_dimension_numbers<[1], [0], [0], [1], [0, 0, 1, 1], [], []>} : vector<8x8xf32>, vector<8x32xf32>, vector<8x32xf32> -> vector<8x32xf32>
    %38 = arith.addf %18, %37 : vector<8x32xf32>
    %39 = vector.extract_strided_slice %11 {offsets = [0, 8], sizes = [8, 8], strides = [1, 1]} : vector<8x64xf32> to vector<8x8xf32>
    %40 = vector.extract_strided_slice %11 {offsets = [0, 40], sizes = [8, 8], strides = [1, 1]} : vector<8x64xf32> to vector<8x8xf32>
    %41 = vector.extract_strided_slice %16 {offsets = [0, 8], sizes = [8, 8], strides = [1, 1]} : vector<8x32xf32> to vector<8x8xf32>
    %cst_26 = arith.constant dense<0.000000e+00> : vector<8x8xf32>
    %42 = tpu.matmul %39, %40, %cst_26 {dimension_numbers = #tpu.dot_dimension_numbers<[1], [1], [0], [0], [0, 0, 1, 0], [], []>} : vector<8x8xf32>, vector<8x8xf32>, vector<8x8xf32> -> vector<8x8xf32>
    %cst_27 = arith.constant 0.353553385 : f32
    %43 = vector.broadcast %cst_27 : f32 to vector<8x8xf32>
    %44 = arith.mulf %42, %43 : vector<8x8xf32>
    %cst_28 = arith.constant dense<0xFF800000> : vector<8xf32>
    %45 = vector.multi_reduction <maximumf>, %44, %cst_28 [1] : vector<8x8xf32> to vector<8xf32>
    %46 = vector.shape_cast %45 : vector<8xf32> to vector<8x1xf32>
    %47 = vector.broadcast %46 : vector<8x1xf32> to vector<8x8xf32>
    %48 = arith.subf %44, %47 : vector<8x8xf32>
    %49 = math.exp %48 : vector<8x8xf32>
    %cst_29 = arith.constant dense<0.000000e+00> : vector<8xf32>
    %50 = vector.multi_reduction <add>, %49, %cst_29 [1] : vector<8x8xf32> to vector<8xf32>
    %51 = vector.shape_cast %50 : vector<8xf32> to vector<8x1xf32>
    %52 = tpu.reciprocal %51 {approx = true} : vector<8x1xf32> -> vector<8x1xf32>
    %53 = vector.broadcast %52 : vector<8x1xf32> to vector<8x8xf32>
    %54 = arith.mulf %49, %53 : vector<8x8xf32>
    %cst_30 = arith.constant dense<0.000000e+00> : vector<8x8xf32>
    %55 = tpu.matmul %54, %41, %cst_30 {dimension_numbers = #tpu.dot_dimension_numbers<[1], [0], [0], [1], [0, 0, 1, 1], [], []>} : vector<8x8xf32>, vector<8x8xf32>, vector<8x8xf32> -> vector<8x8xf32>
    %56 = vector.extract_strided_slice %17 {offsets = [8, 0], sizes = [8, 32], strides = [1, 1]} : vector<32x32xf32> to vector<8x32xf32>
    %cst_31 = arith.constant dense<0.000000e+00> : vector<8x32xf32>
    %57 = tpu.matmul %55, %56, %cst_31 {dimension_numbers = #tpu.dot_dimension_numbers<[1], [0], [0], [1], [0, 0, 1, 1], [], []>} : vector<8x8xf32>, vector<8x32xf32>, vector<8x32xf32> -> vector<8x32xf32>
    %58 = arith.addf %38, %57 : vector<8x32xf32>
    %59 = vector.extract_strided_slice %11 {offsets = [0, 16], sizes = [8, 8], strides = [1, 1]} : vector<8x64xf32> to vector<8x8xf32>
    %60 = vector.extract_strided_slice %11 {offsets = [0, 48], sizes = [8, 8], strides = [1, 1]} : vector<8x64xf32> to vector<8x8xf32>
    %61 = vector.extract_strided_slice %16 {offsets = [0, 16], sizes = [8, 8], strides = [1, 1]} : vector<8x32xf32> to vector<8x8xf32>
    %cst_32 = arith.constant dense<0.000000e+00> : vector<8x8xf32>
    %62 = tpu.matmul %59, %60, %cst_32 {dimension_numbers = #tpu.dot_dimension_numbers<[1], [1], [0], [0], [0, 0, 1, 0], [], []>} : vector<8x8xf32>, vector<8x8xf32>, vector<8x8xf32> -> vector<8x8xf32>
    %cst_33 = arith.constant 0.353553385 : f32
    %63 = vector.broadcast %cst_33 : f32 to vector<8x8xf32>
    %64 = arith.mulf %62, %63 : vector<8x8xf32>
    %cst_34 = arith.constant dense<0xFF800000> : vector<8xf32>
    %65 = vector.multi_reduction <maximumf>, %64, %cst_34 [1] : vector<8x8xf32> to vector<8xf32>
    %66 = vector.shape_cast %65 : vector<8xf32> to vector<8x1xf32>
    %67 = vector.broadcast %66 : vector<8x1xf32> to vector<8x8xf32>
    %68 = arith.subf %64, %67 : vector<8x8xf32>
    %69 = math.exp %68 : vector<8x8xf32>
    %cst_35 = arith.constant dense<0.000000e+00> : vector<8xf32>
    %70 = vector.multi_reduction <add>, %69, %cst_35 [1] : vector<8x8xf32> to vector<8xf32>
    %71 = vector.shape_cast %70 : vector<8xf32> to vector<8x1xf32>
    %72 = tpu.reciprocal %71 {approx = true} : vector<8x1xf32> -> vector<8x1xf32>
    %73 = vector.broadcast %72 : vector<8x1xf32> to vector<8x8xf32>
    %74 = arith.mulf %69, %73 : vector<8x8xf32>
    %cst_36 = arith.constant dense<0.000000e+00> : vector<8x8xf32>
    %75 = tpu.matmul %74, %61, %cst_36 {dimension_numbers = #tpu.dot_dimension_numbers<[1], [0], [0], [1], [0, 0, 1, 1], [], []>} : vector<8x8xf32>, vector<8x8xf32>, vector<8x8xf32> -> vector<8x8xf32>
    %76 = vector.extract_strided_slice %17 {offsets = [16, 0], sizes = [8, 32], strides = [1, 1]} : vector<32x32xf32> to vector<8x32xf32>
    %cst_37 = arith.constant dense<0.000000e+00> : vector<8x32xf32>
    %77 = tpu.matmul %75, %76, %cst_37 {dimension_numbers = #tpu.dot_dimension_numbers<[1], [0], [0], [1], [0, 0, 1, 1], [], []>} : vector<8x8xf32>, vector<8x32xf32>, vector<8x32xf32> -> vector<8x32xf32>
    %78 = arith.addf %58, %77 : vector<8x32xf32>
    %79 = vector.extract_strided_slice %11 {offsets = [0, 24], sizes = [8, 8], strides = [1, 1]} : vector<8x64xf32> to vector<8x8xf32>
    %80 = vector.extract_strided_slice %11 {offsets = [0, 56], sizes = [8, 8], strides = [1, 1]} : vector<8x64xf32> to vector<8x8xf32>
    %81 = vector.extract_strided_slice %16 {offsets = [0, 24], sizes = [8, 8], strides = [1, 1]} : vector<8x32xf32> to vector<8x8xf32>
    %cst_38 = arith.constant dense<0.000000e+00> : vector<8x8xf32>
    %82 = tpu.matmul %79, %80, %cst_38 {dimension_numbers = #tpu.dot_dimension_numbers<[1], [1], [0], [0], [0, 0, 1, 0], [], []>} : vector<8x8xf32>, vector<8x8xf32>, vector<8x8xf32> -> vector<8x8xf32>
    %cst_39 = arith.constant 0.353553385 : f32
    %83 = vector.broadcast %cst_39 : f32 to vector<8x8xf32>
    %84 = arith.mulf %82, %83 : vector<8x8xf32>
    %cst_40 = arith.constant dense<0xFF800000> : vector<8xf32>
    %85 = vector.multi_reduction <maximumf>, %84, %cst_40 [1] : vector<8x8xf32> to vector<8xf32>
    %86 = vector.shape_cast %85 : vector<8xf32> to vector<8x1xf32>
    %87 = vector.broadcast %86 : vector<8x1xf32> to vector<8x8xf32>
    %88 = arith.subf %84, %87 : vector<8x8xf32>
    %89 = math.exp %88 : vector<8x8xf32>
    %cst_41 = arith.constant dense<0.000000e+00> : vector<8xf32>
    %90 = vector.multi_reduction <add>, %89, %cst_41 [1] : vector<8x8xf32> to vector<8xf32>
    %91 = vector.shape_cast %90 : vector<8xf32> to vector<8x1xf32>
    %92 = tpu.reciprocal %91 {approx = true} : vector<8x1xf32> -> vector<8x1xf32>
    %93 = vector.broadcast %92 : vector<8x1xf32> to vector<8x8xf32>
    %94 = arith.mulf %89, %93 : vector<8x8xf32>
    %cst_42 = arith.constant dense<0.000000e+00> : vector<8x8xf32>
    %95 = tpu.matmul %94, %81, %cst_42 {dimension_numbers = #tpu.dot_dimension_numbers<[1], [0], [0], [1], [0, 0, 1, 1], [], []>} : vector<8x8xf32>, vector<8x8xf32>, vector<8x8xf32> -> vector<8x8xf32>
    %96 = vector.extract_strided_slice %17 {offsets = [24, 0], sizes = [8, 32], strides = [1, 1]} : vector<32x32xf32> to vector<8x32xf32>
    %cst_43 = arith.constant dense<0.000000e+00> : vector<8x32xf32>
    %97 = tpu.matmul %95, %96, %cst_43 {dimension_numbers = #tpu.dot_dimension_numbers<[1], [0], [0], [1], [0, 0, 1, 1], [], []>} : vector<8x8xf32>, vector<8x32xf32>, vector<8x32xf32> -> vector<8x32xf32>
    %98 = arith.addf %78, %97 : vector<8x32xf32>
    %99 = arith.addf %1, %98 : vector<8x32xf32>
    %c0_44 = arith.constant 0 : index
    %c0_45 = arith.constant 0 : index
    %100 = vector.load %arg9[%c0_44, %c0_45] : memref<1x32xf32, #tpu.memory_space<vmem>>, vector<1x32xf32>
    %101 = vector.broadcast %100 : vector<1x32xf32> to vector<8x32xf32>
    %102 = arith.addf %99, %101 : vector<8x32xf32>
    %cst_46 = arith.constant dense<0.000000e+00> : vector<8xf32>
    %103 = vector.multi_reduction <add>, %102, %cst_46 [1] : vector<8x32xf32> to vector<8xf32>
    %104 = vector.shape_cast %103 : vector<8xf32> to vector<8x1xf32>
    %cst_47 = arith.constant 3.200000e+01 : f32
    %105 = vector.broadcast %cst_47 : f32 to vector<8x1xf32>
    %106 = arith.divf %104, %105 : vector<8x1xf32>
    %107 = vector.broadcast %106 : vector<8x1xf32> to vector<8x32xf32>
    %108 = arith.subf %102, %107 : vector<8x32xf32>
    %109 = arith.mulf %108, %108 : vector<8x32xf32>
    %cst_48 = arith.constant dense<0.000000e+00> : vector<8xf32>
    %110 = vector.multi_reduction <add>, %109, %cst_48 [1] : vector<8x32xf32> to vector<8xf32>
    %111 = vector.shape_cast %110 : vector<8xf32> to vector<8x1xf32>
    %cst_49 = arith.constant 3.200000e+01 : f32
    %112 = vector.broadcast %cst_49 : f32 to vector<8x1xf32>
    %113 = arith.divf %111, %112 : vector<8x1xf32>
    %114 = vector.broadcast %106 : vector<8x1xf32> to vector<8x32xf32>
    %115 = arith.subf %102, %114 : vector<8x32xf32>
    %cst_50 = arith.constant 9.99999974E-6 : f32
    %116 = vector.broadcast %cst_50 : f32 to vector<8x1xf32>
    %117 = arith.addf %113, %116 : vector<8x1xf32>
    %118 = math.rsqrt %117 : vector<8x1xf32>
    %119 = vector.broadcast %118 : vector<8x1xf32> to vector<8x32xf32>
    %120 = arith.mulf %115, %119 : vector<8x32xf32>
    %c0_51 = arith.constant 0 : index
    %c0_52 = arith.constant 0 : index
    %121 = vector.load %arg10[%c0_51, %c0_52] : memref<1x32xf32, #tpu.memory_space<vmem>>, vector<1x32xf32>
    %122 = vector.broadcast %121 : vector<1x32xf32> to vector<8x32xf32>
    %123 = arith.mulf %120, %122 : vector<8x32xf32>
    %c0_53 = arith.constant 0 : index
    %c0_54 = arith.constant 0 : index
    %124 = vector.load %arg11[%c0_53, %c0_54] : memref<1x32xf32, #tpu.memory_space<vmem>>, vector<1x32xf32>
    %125 = vector.broadcast %124 : vector<1x32xf32> to vector<8x32xf32>
    %126 = arith.addf %123, %125 : vector<8x32xf32>
    %c0_55 = arith.constant 0 : index
    %c0_56 = arith.constant 0 : index
    %c0_57 = arith.constant 0 : index
    %127 = vector.load %arg12[%c0_55, %c0_56, %c0_57] : memref<1x8x32xf32, #tpu.memory_space<vmem>>, vector<1x8x32xf32>
    %128 = vector.shape_cast %127 : vector<1x8x32xf32> to vector<8x32xf32>
    %129 = vector.shape_cast %126 : vector<8x32xf32> to vector<1x8x32xf32>
    tpu.vector_store %arg12[%c0_55, %c0_56, %c0_57], %129 {strides = array<i32>} : memref<1x8x32xf32, #tpu.memory_space<vmem>>, vector<1x8x32xf32>,
    return
  }
  func.func @transform_0(%arg0: i32) -> (i32, i32, i32) {
    %c0_i32 = arith.constant 0 : i32
    %c0_i32_0 = arith.constant 0 : i32
    %c0_i32_1 = arith.constant 0 : i32
    return %arg0, %c0_i32, %c0_i32_0 : i32, i32, i32
  }
  func.func @transform_1(%arg0: i32) -> (i32, i32, i32) {
    %c0_i32 = arith.constant 0 : i32
    %c0_i32_0 = arith.constant 0 : i32
    %c0_i32_1 = arith.constant 0 : i32
    return %arg0, %c0_i32, %c0_i32_0 : i32, i32, i32
  }
  func.func @transform_2(%arg0: i32) -> (i32, i32, i32) {
    %c0_i32 = arith.constant 0 : i32
    %c0_i32_0 = arith.constant 0 : i32
    %c0_i32_1 = arith.constant 0 : i32
    return %arg0, %c0_i32, %c0_i32_0 : i32, i32, i32
  }
  func.func @transform_3(%arg0: i32) -> (i32, i32) {
    %c0_i32 = arith.constant 0 : i32
    %c0_i32_0 = arith.constant 0 : i32
    %c0_i32_1 = arith.constant 0 : i32
    return %c0_i32, %c0_i32_0 : i32, i32
  }
  func.func @transform_4(%arg0: i32) -> (i32, i32) {
    %c0_i32 = arith.constant 0 : i32
    %c0_i32_0 = arith.constant 0 : i32
    %c0_i32_1 = arith.constant 0 : i32
    return %c0_i32, %c0_i32_0 : i32, i32
  }
  func.func @transform_5(%arg0: i32) -> (i32, i32) {
    %c0_i32 = arith.constant 0 : i32
    %c0_i32_0 = arith.constant 0 : i32
    %c0_i32_1 = arith.constant 0 : i32
    return %c0_i32, %c0_i32_0 : i32, i32
  }
  func.func @transform_6(%arg0: i32) -> (i32, i32) {
    %c0_i32 = arith.constant 0 : i32
    %c0_i32_0 = arith.constant 0 : i32
    %c0_i32_1 = arith.constant 0 : i32
    return %c0_i32, %c0_i32_0 : i32, i32
  }
  func.func @transform_7(%arg0: i32) -> (i32, i32) {
    %c0_i32 = arith.constant 0 : i32
    %c0_i32_0 = arith.constant 0 : i32
    %c0_i32_1 = arith.constant 0 : i32
    return %c0_i32, %c0_i32_0 : i32, i32
  }
  func.func @transform_8(%arg0: i32) -> (i32, i32) {
    %c0_i32 = arith.constant 0 : i32
    %c0_i32_0 = arith.constant 0 : i32
    %c0_i32_1 = arith.constant 0 : i32
    return %c0_i32, %c0_i32_0 : i32, i32
  }
  func.func @transform_9(%arg0: i32) -> (i32, i32) {
    %c0_i32 = arith.constant 0 : i32
    %c0_i32_0 = arith.constant 0 : i32
    %c0_i32_1 = arith.constant 0 : i32
    return %c0_i32, %c0_i32_0 : i32, i32
  }
  func.func @transform_10(%arg0: i32) -> (i32, i32) {
    %c0_i32 = arith.constant 0 : i32
    %c0_i32_0 = arith.constant 0 : i32
    %c0_i32_1 = arith.constant 0 : i32
    return %c0_i32, %c0_i32_0 : i32, i32
  }
  func.func @transform_11(%arg0: i32) -> (i32, i32, i32) {
    %c0_i32 = arith.constant 0 : i32
    %c0_i32_0 = arith.constant 0 : i32
    %c0_i32_1 = arith.constant 0 : i32
    return %arg0, %c0_i32, %c0_i32_0 : i32, i32, i32
  }
}

</mosaic_0001>

<llo_original>
// kernel: tpu_custom_call.1
$region0: #{tpu_custom_call.1}
  #allocation0 [shape = 'u32[]', space=smem, size = 0x4, offset = 0x4, fixed_abs, tag = 'smem constant byte address 0x4 - core index']
  #allocation1 [shape = 'u32[144,128]{1,0:T(1,128)}', space=vmem, size = 0x12000, scoped, tag = 'internal scratch']
  %s0 = inlined_call_operand.hbm [shape: f32[2,8,32], index: 0, kind: input, shape index: {}]
  %s1 = inlined_call_operand.hbm [shape: f32[2,8,32], index: 1, kind: input, shape index: {}]
  %s2 = inlined_call_operand.hbm [shape: f32[2,8,32], index: 2, kind: input, shape index: {}]
  %s3 = inlined_call_operand.hbm [shape: f32[32,64], index: 3, kind: input, shape index: {}]
  %s4 = inlined_call_operand.vmem [shape: f32[1,64], index: 4, kind: input, shape index: {}]
  %s5 = inlined_call_operand.hbm [shape: f32[32,32], index: 5, kind: input, shape index: {}]
  %s6 = inlined_call_operand.vmem [shape: f32[1,32], index: 6, kind: input, shape index: {}]
  %s7 = inlined_call_operand.hbm [shape: f32[32,32], index: 7, kind: input, shape index: {}]
  %s8 = inlined_call_operand.vmem [shape: f32[1,32], index: 8, kind: input, shape index: {}]
  %s9 = inlined_call_operand.vmem [shape: f32[1,32], index: 9, kind: input, shape index: {}]
  %s10 = inlined_call_operand.vmem [shape: f32[1,32], index: 10, kind: input, shape index: {}]
  %s11 = inlined_call_operand.hbm [shape: f32[2,8,32], index: 11, kind: output, shape index: {}]
  %s12 = sld [smem:[#allocation0]]
  $region101: #{tpu_custom_call.1} parent=0
    _
  %s14 = ssub.s32 1, %s12
  %s15 = scalar_select 0, %s14, %s12
  $region1: #{tpu_custom_call.1} parent=0
    #allocation2 [shape = 'u8[8192]{0}', space=vmem, size = 0x2000, scoped, tag = 'input window, operand 0']
    #allocation3 [shape = 's32[2]{0}', space=sflag, size = 0x8, scoped, tag = 'scoped memory for tpu_custom_call.1']
    #allocation4 [shape = 's32[2]{0}', space=sflag, size = 0x8, scoped, tag = 'scoped memory for tpu_custom_call.1']
    #allocation5 [shape = 'u8[8192]{0}', space=vmem, size = 0x2000, scoped, tag = 'input window, operand 1']
    #allocation6 [shape = 's32[2]{0}', space=sflag, size = 0x8, scoped, tag = 'scoped memory for tpu_custom_call.1']
    #allocation7 [shape = 'u8[8192]{0}', space=vmem, size = 0x2000, scoped, tag = 'input window, operand 2']
    #allocation8 [shape = 'u8[16384]{0}', space=vmem, size = 0x4000, scoped, tag = 'input window, operand 3, single buffered']
    #allocation9 [shape = 's32[1]{0}', space=sflag, size = 0x4, scoped, tag = 'scoped memory for tpu_custom_call.1']
    #allocation10 [shape = 'u8[16384]{0}', space=vmem, size = 0x4000, scoped, tag = 'input window, operand 5, single buffered']
    #allocation11 [shape = 'u8[16384]{0}', space=vmem, size = 0x4000, scoped, tag = 'input window, operand 7, single buffered']
    #allocation12 [shape = 's32[1]{0}', space=sflag, size = 0x4, scoped, tag = 'scoped memory for tpu_custom_call.1']
    #allocation13 [shape = 'u8[8192]{0}', space=vmem, size = 0x2000, scoped, tag = 'output window, operand 0']
    %16 = vsyncpa [#allocation3], 0
    %s17 = scalar_lea.sflag [#allocation3], 1
    %18 = vsyncpa %s17, 0
    %19 = vsyncpa [#allocation6], 0
    %s20 = scalar_lea.sflag [#allocation6], 1
    %21 = vsyncpa %s20, 0
    %22 = vsyncpa [#allocation9], 0
    %23 = vsyncpa [#allocation12], 0
    %24 = vsyncpa [#allocation4], 0
    %s25 = scalar_lea.sflag [#allocation4], 1
    %26 = vsyncpa %s25, 0
    loop: start=0, step=1, limit=4
    $region2: #{tpu_custom_call.1} parent=1 // loop_pre_header
      _
    $region3: #{tpu_custom_call.1} parent=1 // loop_header
      %s28 = sphi 0, %s32
      %p29 = scmp.ge.s32.totalorder %s28, 4
      %s38 = sphi 0, %s40
      %s41 = sphi 0, %s38
      %s42 = sphi 0, %s41
      %s58 = sphi 0, %s42
      %s64 = sphi 0, %s66
      %s67 = sphi 0, %s64
      %s68 = sphi 0, %s67
      %s84 = sphi 0, %s68
      %s90 = sphi 0, %s92
      %s93 = sphi 0, %s90
      %s94 = sphi 0, %s93
      %s110 = sphi 0, %s94
      %s114 = sphi 0, %s114
      %s116 = sphi 0, %s114
      %s117 = sphi 0, %s116
      %s131 = sphi 0, %s117
      %s135 = sphi 0, %s135
      %s137 = sphi 0, %s135
      %s138 = sphi 0, %s137
      %s152 = sphi 0, %s138
      %s156 = sphi 0, %s156
      %s158 = sphi 0, %s156
      %s159 = sphi 0, %s158
      %s173 = sphi 0, %s159
      %s177 = sphi 0, %s177
      %s179 = sphi 0, %s177
      %s180 = sphi 0, %s179
      %s194 = sphi 0, %s180
      %s198 = sphi 0, %s198
      %s200 = sphi 0, %s198
      %s201 = sphi 0, %s200
      %s215 = sphi 0, %s201
      %s219 = sphi 0, %s219
      %s221 = sphi 0, %s219
      %s222 = sphi 0, %s221
      %s236 = sphi 0, %s222
      %s240 = sphi 0, %s240
      %s242 = sphi 0, %s240
      %s243 = sphi 0, %s242
      %s257 = sphi 0, %s243
      %s261 = sphi 0, %s261
      %s263 = sphi 0, %s261
      %s264 = sphi 0, %s263
      %s278 = sphi 0, %s264
      %s284 = sphi 0, %s286
      %s287 = sphi 0, %s284
      %s288 = sphi 0, %s287
      %s304 = sphi 0, %s288
    $region4: #{tpu_custom_call.1} parent=1 // loop_header_branch
      %31 = sbr.rel (%p29) target = $region8
    $region5: #{tpu_custom_call.1} parent=1 // loop_body
      %s33 = ssub.s32 %s28, 1
      %s34 = ssub.s32 %s28, 2
      %s35 = sadd.s32 %s28, 1
      %s36 = ssub.s32 %s28, %s35
      %p37 = scmp.eq.s32.totalorder %s36, 0
      %s39 = sadd.s32 %s38, 1
      %s40 = scalar_select %p37, %s38, %s39
      %p43 = pneg %p37
      %p44 = scmp.eq.s32.totalorder %s28, 1
      %p45 = por %p43, %p44
      %p46 = scmp.ne.s32.totalorder %s38, %s41
      %p47 = scmp.eq.s32.totalorder %s28, 0
      %p48 = por %p46, %p47
      %p49 = scmp.ne.s32.totalorder %s38, %s41
      %p50 = scmp.eq.s32.totalorder %s33, 1
      %p51 = por %p49, %p50
      %p52 = scmp.ne.s32.totalorder %s41, %s42
      %p53 = scmp.eq.s32.totalorder %s33, 0
      %p54 = por %p52, %p53
      %p55 = scmp.ne.s32.totalorder %s41, %s42
      %p56 = scmp.eq.s32.totalorder %s34, 1
      %p57 = por %p55, %p56
      %p59 = scmp.ne.s32.totalorder %s42, %s58
      %p60 = scmp.eq.s32.totalorder %s34, 0
      %p61 = por %p59, %p60
      %s62 = ssub.s32 %s28, %s35
      %p63 = scmp.eq.s32.totalorder %s62, 0
      %s65 = sadd.s32 %s64, 1
      %s66 = scalar_select %p63, %s64, %s65
      %p69 = pneg %p63
      %p70 = scmp.eq.s32.totalorder %s28, 1
      %p71 = por %p69, %p70
      %p72 = scmp.ne.s32.totalorder %s64, %s67
      %p73 = scmp.eq.s32.totalorder %s28, 0
      %p74 = por %p72, %p73
      %p75 = scmp.ne.s32.totalorder %s64, %s67
      %p76 = scmp.eq.s32.totalorder %s33, 1
      %p77 = por %p75, %p76
      %p78 = scmp.ne.s32.totalorder %s67, %s68
      %p79 = scmp.eq.s32.totalorder %s33, 0
      %p80 = por %p78, %p79
      %p81 = scmp.ne.s32.totalorder %s67, %s68
      %p82 = scmp.eq.s32.totalorder %s34, 1
      %p83 = por %p81, %p82
      %p85 = scmp.ne.s32.totalorder %s68, %s84
      %p86 = scmp.eq.s32.totalorder %s34, 0
      %p87 = por %p85, %p86
      %s88 = ssub.s32 %s28, %s35
      %p89 = scmp.eq.s32.totalorder %s88, 0
      %s91 = sadd.s32 %s90, 1
      %s92 = scalar_select %p89, %s90, %s91
      %p95 = pneg %p89
      %p96 = scmp.eq.s32.totalorder %s28, 1
      %p97 = por %p95, %p96
      %p98 = scmp.ne.s32.totalorder %s90, %s93
      %p99 = scmp.eq.s32.totalorder %s28, 0
      %p100 = por %p98, %p99
      %p101 = scmp.ne.s32.totalorder %s90, %s93
      %p102 = scmp.eq.s32.totalorder %s33, 1
      %p103 = por %p101, %p102
      %p104 = scmp.ne.s32.totalorder %s93, %s94
      %p105 = scmp.eq.s32.totalorder %s33, 0
      %p106 = por %p104, %p105
      %p107 = scmp.ne.s32.totalorder %s93, %s94
      %p108 = scmp.eq.s32.totalorder %s34, 1
      %p109 = por %p107, %p108
      %p111 = scmp.ne.s32.totalorder %s94, %s110
      %p112 = scmp.eq.s32.totalorder %s34, 0
      %p113 = por %p111, %p112
      %s115 = sadd.s32 %s114, 1
      %p118 = scmp.eq.s32.totalorder %s28, 1
      %p119 = scmp.ne.s32.totalorder %s114, %s116
      %p120 = scmp.eq.s32.totalorder %s28, 0
      %p121 = por %p119, %p120
      %p122 = scmp.ne.s32.totalorder %s114, %s116
      %p123 = scmp.eq.s32.totalorder %s33, 1
      %p124 = por %p122, %p123
      %p125 = scmp.ne.s32.totalorder %s116, %s117
      %p126 = scmp.eq.s32.totalorder %s33, 0
      %p127 = por %p125, %p126
      %p128 = scmp.ne.s32.totalorder %s116, %s117
      %p129 = scmp.eq.s32.totalorder %s34, 1
      %p130 = por %p128, %p129
      %p132 = scmp.ne.s32.totalorder %s117, %s131
      %p133 = scmp.eq.s32.totalorder %s34, 0
      %p134 = por %p132, %p133
      %s136 = sadd.s32 %s135, 1
      %p139 = scmp.eq.s32.totalorder %s28, 1
      %p140 = scmp.ne.s32.totalorder %s135, %s137
      %p141 = scmp.eq.s32.totalorder %s28, 0
      %p142 = por %p140, %p141
      %p143 = scmp.ne.s32.totalorder %s135, %s137
      %p144 = scmp.eq.s32.totalorder %s33, 1
      %p145 = por %p143, %p144
      %p146 = scmp.ne.s32.totalorder %s137, %s138
      %p147 = scmp.eq.s32.totalorder %s33, 0
      %p148 = por %p146, %p147
      %p149 = scmp.ne.s32.totalorder %s137, %s138
      %p150 = scmp.eq.s32.totalorder %s34, 1
      %p151 = por %p149, %p150
      %p153 = scmp.ne.s32.totalorder %s138, %s152
      %p154 = scmp.eq.s32.totalorder %s34, 0
      %p155 = por %p153, %p154
      %s157 = sadd.s32 %s156, 1
      %p160 = scmp.eq.s32.totalorder %s28, 1
      %p161 = scmp.ne.s32.totalorder %s156, %s158
      %p162 = scmp.eq.s32.totalorder %s28, 0
      %p163 = por %p161, %p162
      %p164 = scmp.ne.s32.totalorder %s156, %s158
      %p165 = scmp.eq.s32.totalorder %s33, 1
      %p166 = por %p164, %p165
      %p167 = scmp.ne.s32.totalorder %s158, %s159
      %p168 = scmp.eq.s32.totalorder %s33, 0
      %p169 = por %p167, %p168
      %p170 = scmp.ne.s32.totalorder %s158, %s159
      %p171 = scmp.eq.s32.totalorder %s34, 1
      %p172 = por %p170, %p171
      %p174 = scmp.ne.s32.totalorder %s159, %s173
      %p175 = scmp.eq.s32.totalorder %s34, 0
      %p176 = por %p174, %p175
      %s178 = sadd.s32 %s177, 1
      %p181 = scmp.eq.s32.totalorder %s28, 1
      %p182 = scmp.ne.s32.totalorder %s177, %s179
      %p183 = scmp.eq.s32.totalorder %s28, 0
      %p184 = por %p182, %p183
      %p185 = scmp.ne.s32.totalorder %s177, %s179
      %p186 = scmp.eq.s32.totalorder %s33, 1
      %p187 = por %p185, %p186
      %p188 = scmp.ne.s32.totalorder %s179, %s180
      %p189 = scmp.eq.s32.totalorder %s33, 0
      %p190 = por %p188, %p189
      %p191 = scmp.ne.s32.totalorder %s179, %s180
      %p192 = scmp.eq.s32.totalorder %s34, 1
      %p193 = por %p191, %p192
      %p195 = scmp.ne.s32.totalorder %s180, %s194
      %p196 = scmp.eq.s32.totalorder %s34, 0
      %p197 = por %p195, %p196
      %s199 = sadd.s32 %s198, 1
      %p202 = scmp.eq.s32.totalorder %s28, 1
      %p203 = scmp.ne.s32.totalorder %s198, %s200
      %p204 = scmp.eq.s32.totalorder %s28, 0
      %p205 = por %p203, %p204
      %p206 = scmp.ne.s32.totalorder %s198, %s200
      %p207 = scmp.eq.s32.totalorder %s33, 1
      %p208 = por %p206, %p207
      %p209 = scmp.ne.s32.totalorder %s200, %s201
      %p210 = scmp.eq.s32.totalorder %s33, 0
      %p211 = por %p209, %p210
      %p212 = scmp.ne.s32.totalorder %s200, %s201
      %p213 = scmp.eq.s32.totalorder %s34, 1
      %p214 = por %p212, %p213
      %p216 = scmp.ne.s32.totalorder %s201, %s215
      %p217 = scmp.eq.s32.totalorder %s34, 0
      %p218 = por %p216, %p217
      %s220 = sadd.s32 %s219, 1
      %p223 = scmp.eq.s32.totalorder %s28, 1
      %p224 = scmp.ne.s32.totalorder %s219, %s221
      %p225 = scmp.eq.s32.totalorder %s28, 0
      %p226 = por %p224, %p225
      %p227 = scmp.ne.s32.totalorder %s219, %s221
      %p228 = scmp.eq.s32.totalorder %s33, 1
      %p229 = por %p227, %p228
      %p230 = scmp.ne.s32.totalorder %s221, %s222
      %p231 = scmp.eq.s32.totalorder %s33, 0
      %p232 = por %p230, %p231
      %p233 = scmp.ne.s32.totalorder %s221, %s222
      %p234 = scmp.eq.s32.totalorder %s34, 1
      %p235 = por %p233, %p234
      %p237 = scmp.ne.s32.totalorder %s222, %s236
      %p238 = scmp.eq.s32.totalorder %s34, 0
      %p239 = por %p237, %p238
      %s241 = sadd.s32 %s240, 1
      %p244 = scmp.eq.s32.totalorder %s28, 1
      %p245 = scmp.ne.s32.totalorder %s240, %s242
      %p246 = scmp.eq.s32.totalorder %s28, 0
      %p247 = por %p245, %p246
      %p248 = scmp.ne.s32.totalorder %s240, %s242
      %p249 = scmp.eq.s32.totalorder %s33, 1
      %p250 = por %p248, %p249
      %p251 = scmp.ne.s32.totalorder %s242, %s243
      %p252 = scmp.eq.s32.totalorder %s33, 0
      %p253 = por %p251, %p252
      %p254 = scmp.ne.s32.totalorder %s242, %s243
      %p255 = scmp.eq.s32.totalorder %s34, 1
      %p256 = por %p254, %p255
      %p258 = scmp.ne.s32.totalorder %s243, %s257
      %p259 = scmp.eq.s32.totalorder %s34, 0
      %p260 = por %p258, %p259
      %s262 = sadd.s32 %s261, 1
      %p265 = scmp.eq.s32.totalorder %s28, 1
      %p266 = scmp.ne.s32.totalorder %s261, %s263
      %p267 = scmp.eq.s32.totalorder %s28, 0
      %p268 = por %p266, %p267
      %p269 = scmp.ne.s32.totalorder %s261, %s263
      %p270 = scmp.eq.s32.totalorder %s33, 1
      %p271 = por %p269, %p270
      %p272 = scmp.ne.s32.totalorder %s263, %s264
      %p273 = scmp.eq.s32.totalorder %s33, 0
      %p274 = por %p272, %p273
      %p275 = scmp.ne.s32.totalorder %s263, %s264
      %p276 = scmp.eq.s32.totalorder %s34, 1
      %p277 = por %p275, %p276
      %p279 = scmp.ne.s32.totalorder %s264, %s278
      %p280 = scmp.eq.s32.totalorder %s34, 0
      %p281 = por %p279, %p280
      %s282 = ssub.s32 %s28, %s35
      %p283 = scmp.eq.s32.totalorder %s282, 0
      %s285 = sadd.s32 %s284, 1
      %s286 = scalar_select %p283, %s284, %s285
      %p289 = pneg %p283
      %p290 = scmp.eq.s32.totalorder %s28, 1
      %p291 = por %p289, %p290
      %p292 = scmp.ne.s32.totalorder %s284, %s287
      %p293 = scmp.eq.s32.totalorder %s28, 0
      %p294 = por %p292, %p293
      %p295 = scmp.ne.s32.totalorder %s284, %s287
      %p296 = scmp.eq.s32.totalorder %s33, 1
      %p297 = por %p295, %p296
      %p298 = scmp.ne.s32.totalorder %s287, %s288
      %p299 = scmp.eq.s32.totalorder %s33, 0
      %p300 = por %p298, %p299
      %p301 = scmp.ne.s32.totalorder %s287, %s288
      %p302 = scmp.eq.s32.totalorder %s34, 1
      %p303 = por %p301, %p302
      %p305 = scmp.ne.s32.totalorder %s288, %s304
      %p306 = scmp.eq.s32.totalorder %s34, 0
      %p307 = por %p305, %p306
      %p308 = scmp.le.s32.totalorder 1, %s28
      %p309 = scmp.lt.s32.totalorder %s28, 3
      %p310 = pnand %p308, %p309
      %p311 = pneg %p310
      // Predicated region
      $region9: #{tpu_custom_call.1} parent=5 // pred_check
        _
      $region10: #{tpu_custom_call.1} parent=5 // pred_check_branch
        %313 = sbr.rel (%p310) target = $region12
      $region11: #{tpu_custom_call.1} parent=5 // pred_region
        %s314 = ssub.s32 %s28, 1
        // Predicated region
        $region13: #{tpu_custom_call.1} parent=11 // pred_check
          %p315 = pneg %p127
        $region14: #{tpu_custom_call.1} parent=11 // pred_check_branch
          %317 = sbr.rel (%p315) target = $region16
        $region15: #{tpu_custom_call.1} parent=11 // pred_region
          %s319 = ssub.s32 512, 512
          %320 = vsyncadd [#allocation9], %s319
          %s321 = sshll.u32 [#allocation8], 4
          %s322 = int_to_ptr.vmem [resolvable:$true] %s321
          %327 = dma.hbm_to_vmem [thread:$0]  %s3, 512, %s322, [#allocation9], 128, 128, 8
        $region16: #{tpu_custom_call.1} parent=11 // pred_fallthru
          _
        // Predicated region
        $region17: #{tpu_custom_call.1} parent=11 // pred_check
          %p328 = pneg %p148
        $region18: #{tpu_custom_call.1} parent=11 // pred_check_branch
          %330 = sbr.rel (%p328) target = $region20
        $region19: #{tpu_custom_call.1} parent=11 // pred_region
          _
        $region20: #{tpu_custom_call.1} parent=11 // pred_fallthru
          _
        // Predicated region
        $region21: #{tpu_custom_call.1} parent=11 // pred_check
          %p331 = pneg %p169
        $region22: #{tpu_custom_call.1} parent=11 // pred_check_branch
          %333 = sbr.rel (%p331) target = $region24
        $region23: #{tpu_custom_call.1} parent=11 // pred_region
          %s335 = ssub.s32 512, 512
          %336 = vsyncadd [#allocation9], %s335
          %s337 = sshll.u32 [#allocation10], 4
          %s338 = int_to_ptr.vmem [resolvable:$true] %s337
          %343 = dma.hbm_to_vmem [thread:$0]  %s5, 512, %s338, [#allocation9], 128, 128, 8
        $region24: #{tpu_custom_call.1} parent=11 // pred_fallthru
          _
        // Predicated region
        $region25: #{tpu_custom_call.1} parent=11 // pred_check
          %p344 = pneg %p190
        $region26: #{tpu_custom_call.1} parent=11 // pred_check_branch
          %346 = sbr.rel (%p344) target = $region28
        $region27: #{tpu_custom_call.1} parent=11 // pred_region
          _
        $region28: #{tpu_custom_call.1} parent=11 // pred_fallthru
          _
        // Predicated region
        $region29: #{tpu_custom_call.1} parent=11 // pred_check
          %p347 = pneg %p211
        $region30: #{tpu_custom_call.1} parent=11 // pred_check_branch
          %349 = sbr.rel (%p347) target = $region32
        $region31: #{tpu_custom_call.1} parent=11 // pred_region
          %s351 = ssub.s32 512, 512
          %352 = vsyncadd [#allocation12], %s351
          %s353 = sshll.u32 [#allocation11], 4
          %s354 = int_to_ptr.vmem [resolvable:$true] %s353
          %359 = dma.hbm_to_vmem [thread:$0]  %s7, 512, %s354, [#allocation12], 128, 128, 8
        $region32: #{tpu_custom_call.1} parent=11 // pred_fallthru
          _
        // Predicated region
        $region33: #{tpu_custom_call.1} parent=11 // pred_check
          %p360 = pneg %p232
        $region34: #{tpu_custom_call.1} parent=11 // pred_check_branch
          %362 = sbr.rel (%p360) target = $region36
        $region35: #{tpu_custom_call.1} parent=11 // pred_region
          _
        $region36: #{tpu_custom_call.1} parent=11 // pred_fallthru
          _
        // Predicated region
        $region37: #{tpu_custom_call.1} parent=11 // pred_check
          %p363 = pneg %p253
        $region38: #{tpu_custom_call.1} parent=11 // pred_check_branch
          %365 = sbr.rel (%p363) target = $region40
        $region39: #{tpu_custom_call.1} parent=11 // pred_region
          _
        $region40: #{tpu_custom_call.1} parent=11 // pred_fallthru
          _
        // Predicated region
        $region41: #{tpu_custom_call.1} parent=11 // pred_check
          %p366 = pneg %p274
        $region42: #{tpu_custom_call.1} parent=11 // pred_check_branch
          %368 = sbr.rel (%p366) target = $region44
        $region43: #{tpu_custom_call.1} parent=11 // pred_region
          _
        $region44: #{tpu_custom_call.1} parent=11 // pred_fallthru
          _
      $region12: #{tpu_custom_call.1} parent=5 // pred_fallthru
        _
      %p369 = scmp.lt.s32.totalorder %s28, 2
      // Predicated region
      $region45: #{tpu_custom_call.1} parent=5 // pred_check
        %p370 = pneg %p369
      $region46: #{tpu_custom_call.1} parent=5 // pred_check_branch
        %372 = sbr.rel (%p370) target = $region48
      $region47: #{tpu_custom_call.1} parent=5 // pred_region
        // Predicated region
        $region49: #{tpu_custom_call.1} parent=47 // pred_check
          %p373 = pneg %p48
        $region50: #{tpu_custom_call.1} parent=47 // pred_check_branch
          %375 = sbr.rel (%p373) target = $region52
        $region51: #{tpu_custom_call.1} parent=47 // pred_region
          %s376 = sand.u32 %s38, 1
          %s377 = scalar_lea.sflag [#allocation3], %s376
          %s378 = sand.u32 %s38, 1
          %s379 = smul.addr %s378, 8
          %s380 = scalar_lea.vmem [#allocation2], %s379
          %s382 = ssub.s32 128, 128
          %383 = vsyncadd %s377, %s382
          %s384 = smul.addr %s28, 128
          %s385 = scalar_lea.hbm %s0, %s384
          %s387 = sshll.u32 %s380, 4
          %s388 = int_to_ptr.vmem [resolvable:$true] %s387
          %390 = dma.hbm_to_vmem [thread:$0]  %s385, 128, %s388, %s377
        $region52: #{tpu_custom_call.1} parent=47 // pred_fallthru
          _
        // Predicated region
        $region53: #{tpu_custom_call.1} parent=47 // pred_check
          %p391 = pneg %p74
        $region54: #{tpu_custom_call.1} parent=47 // pred_check_branch
          %393 = sbr.rel (%p391) target = $region56
        $region55: #{tpu_custom_call.1} parent=47 // pred_region
          %s394 = sand.u32 %s28, 1
          %s395 = scalar_lea.sflag [#allocation6], %s394
          %s396 = sand.u32 %s64, 1
          %s397 = smul.addr %s396, 8
          %s398 = scalar_lea.vmem [#allocation5], %s397
          %s400 = ssub.s32 128, 128
          %401 = vsyncadd %s395, %s400
          %s402 = smul.addr %s28, 128
          %s403 = scalar_lea.hbm %s1, %s402
          %s405 = sshll.u32 %s398, 4
          %s406 = int_to_ptr.vmem [resolvable:$true] %s405
          %408 = dma.hbm_to_vmem [thread:$0]  %s403, 128, %s406, %s395
        $region56: #{tpu_custom_call.1} parent=47 // pred_fallthru
          _
        // Predicated region
        $region57: #{tpu_custom_call.1} parent=47 // pred_check
          %p409 = pneg %p100
        $region58: #{tpu_custom_call.1} parent=47 // pred_check_branch
          %411 = sbr.rel (%p409) target = $region60
        $region59: #{tpu_custom_call.1} parent=47 // pred_region
          %s412 = sand.u32 %s28, 1
          %s413 = scalar_lea.sflag [#allocation6], %s412
          %s414 = sand.u32 %s90, 1
          %s415 = smul.addr %s414, 8
          %s416 = scalar_lea.vmem [#allocation7], %s415
          %s418 = ssub.s32 128, 128
          %419 = vsyncadd %s413, %s418
          %s420 = smul.addr %s28, 128
          %s421 = scalar_lea.hbm %s2, %s420
          %s423 = sshll.u32 %s416, 4
          %s424 = int_to_ptr.vmem [resolvable:$true] %s423
          %426 = dma.hbm_to_vmem [thread:$0]  %s421, 128, %s424, %s413
        $region60: #{tpu_custom_call.1} parent=47 // pred_fallthru
          _
      $region48: #{tpu_custom_call.1} parent=5 // pred_fallthru
        _
      %p427 = scmp.le.s32.totalorder 1, %s28
      %p428 = scmp.lt.s32.totalorder %s28, 3
      %p429 = pnand %p427, %p428
      %p430 = pneg %p429
      // Predicated region
      $region61: #{tpu_custom_call.1} parent=5 // pred_check
        _
      $region62: #{tpu_custom_call.1} parent=5 // pred_check_branch
        %432 = sbr.rel (%p429) target = $region64
      $region63: #{tpu_custom_call.1} parent=5 // pred_region
        %s433 = ssub.s32 %s28, 1
        %s434 = sand.u32 %s41, 1
        %s435 = scalar_lea.sflag [#allocation3], %s434
        %s436 = sand.u32 %s41, 1
        %s437 = smul.addr %s436, 8
        %s438 = scalar_lea.vmem [#allocation2], %s437
        // Predicated region
        $region65: #{tpu_custom_call.1} parent=63 // pred_check
          %p439 = pneg %p54
        $region66: #{tpu_custom_call.1} parent=63 // pred_check_branch
          %441 = sbr.rel (%p439) target = $region68
        $region67: #{tpu_custom_call.1} parent=63 // pred_region
          %442 = dma.done %s435, 128
        $region68: #{tpu_custom_call.1} parent=63 // pred_fallthru
          _
        %s443 = sand.u32 %s33, 1
        %s444 = scalar_lea.sflag [#allocation6], %s443
        %s445 = sand.u32 %s67, 1
        %s446 = smul.addr %s445, 8
        %s447 = scalar_lea.vmem [#allocation5], %s446
        // Predicated region
        $region69: #{tpu_custom_call.1} parent=63 // pred_check
          %p448 = pneg %p80
        $region70: #{tpu_custom_call.1} parent=63 // pred_check_branch
          %450 = sbr.rel (%p448) target = $region72
        $region71: #{tpu_custom_call.1} parent=63 // pred_region
          %451 = dma.done %s444, 128
        $region72: #{tpu_custom_call.1} parent=63 // pred_fallthru
          _
        %s452 = sand.u32 %s33, 1
        %s453 = scalar_lea.sflag [#allocation6], %s452
        %s454 = sand.u32 %s93, 1
        %s455 = smul.addr %s454, 8
        %s456 = scalar_lea.vmem [#allocation7], %s455
        // Predicated region
        $region73: #{tpu_custom_call.1} parent=63 // pred_check
          %p457 = pneg %p106
        $region74: #{tpu_custom_call.1} parent=63 // pred_check_branch
          %459 = sbr.rel (%p457) target = $region76
        $region75: #{tpu_custom_call.1} parent=63 // pred_region
          %460 = dma.done %s453, 128
        $region76: #{tpu_custom_call.1} parent=63 // pred_fallthru
          _
        // Predicated region
        $region77: #{tpu_custom_call.1} parent=63 // pred_check
          %p461 = pneg %p127
        $region78: #{tpu_custom_call.1} parent=63 // pred_check_branch
          %463 = sbr.rel (%p461) target = $region80
        $region79: #{tpu_custom_call.1} parent=63 // pred_region
          %464 = dma.done [#allocation9], 512
        $region80: #{tpu_custom_call.1} parent=63 // pred_fallthru
          _
        // Predicated region
        $region81: #{tpu_custom_call.1} parent=63 // pred_check
          %p465 = pneg %p169
        $region82: #{tpu_custom_call.1} parent=63 // pred_check_branch
          %467 = sbr.rel (%p465) target = $region84
        $region83: #{tpu_custom_call.1} parent=63 // pred_region
          %468 = dma.done [#allocation9], 512
        $region84: #{tpu_custom_call.1} parent=63 // pred_fallthru
          _
        // Predicated region
        $region85: #{tpu_custom_call.1} parent=63 // pred_check
          %p469 = pneg %p211
        $region86: #{tpu_custom_call.1} parent=63 // pred_check_branch
          %471 = sbr.rel (%p469) target = $region88
        $region87: #{tpu_custom_call.1} parent=63 // pred_region
          %472 = dma.done [#allocation12], 512
        $region88: #{tpu_custom_call.1} parent=63 // pred_fallthru
          _
        %s473 = sand.u32 %s41, 1
        %s474 = scalar_lea.sflag [#allocation3], %s473
        %s475 = sand.u32 %s41, 1
        %s476 = smul.addr %s475, 8
        %s477 = scalar_lea.vmem [#allocation2], %s476
        %p478 = pneg %p54
        %p479 = pneg %p51
        %s480 = sand.u32 %s33, 1
        %s481 = scalar_lea.sflag [#allocation6], %s480
        %s482 = sand.u32 %s67, 1
        %s483 = smul.addr %s482, 8
        %s484 = scalar_lea.vmem [#allocation5], %s483
        %p485 = pneg %p80
        %p486 = pneg %p77
        %s487 = sand.u32 %s33, 1
        %s488 = scalar_lea.sflag [#allocation6], %s487
        %s489 = sand.u32 %s93, 1
        %s490 = smul.addr %s489, 8
        %s491 = scalar_lea.vmem [#allocation7], %s490
        %p492 = pneg %p106
        %p493 = pneg %p103
        %p494 = pneg %p127
        %p495 = pneg %p124
        %p496 = pneg %p148
        %p497 = pneg %p145
        %p498 = pneg %p169
        %p499 = pneg %p166
        %p500 = pneg %p190
        %p501 = pneg %p187
        %p502 = pneg %p211
        %p503 = pneg %p208
        %p504 = pneg %p232
        %p505 = pneg %p229
        %p506 = pneg %p253
        %p507 = pneg %p250
        %p508 = pneg %p274
        %p509 = pneg %p271
        %p510 = pneg %p300
        %p511 = pneg %p297
        %s512 = sand.u32 %s287, 1
        %s513 = scalar_lea.sflag [#allocation4], %s512
        %s514 = sand.u32 %s287, 1
        %s515 = smul.addr %s514, 8
        %s516 = scalar_lea.vmem [#allocation13], %s515
        %v517 = vld [vmem:[%s438] sm:$0xff]
        %v518 = vld [vmem:[%s447] sm:$0xff]
        %v519 = vld [vmem:[%s456] sm:$0xff]
        %v520 = vadd.f32 %v517, %v518
        %v521 = vld [vmem:[#allocation8] sm:$0xff]
        %v522 = vld [vmem:[#allocation8 + $0x8] sm:$0xff]
        %v523 = vld [vmem:[#allocation8 + $0x10] sm:$0xff]
        %v524 = vld [vmem:[#allocation8 + $0x18] sm:$0xff]
        %v525 = vld [vmem:[%s4] sm:$0x1]
        %v527 = vlaneseq
        %v528 = vshrl.u32 %v527, 7
        %v529 = vsub.s32 0, %v528
        %v530 = vrot.slane %v525, %v529
        %vm532 = vcmask 261120
        %v534 = vsel %vm532, %v520, 0
        %536 = vmatprep.subr.mxu0 0.0
        %537 = vmatpush1.msra.mxu0 %v521
        %538 = vmatprep.subr.mxu0 0.0
        %539 = vmatpush1.msra.mxu0 %v522
        %540 = vmatprep.subr.mxu0 0.0
        %541 = vmatpush1.msra.mxu0 %v523
        %542 = vmatprep.subr.mxu0 0.0
        %543 = vmatpush1.msra.mxu0 %v524
        %544 = vmatprep.subr.mxu0 0.0
        %545 = vmatpush1.msra.mxu0 0.0
        %546 = vmatprep.subr.mxu0 0.0
        %547 = vmatpush1.msra.mxu0 0.0
        %548 = vmatprep.subr.mxu0 0.0
        %549 = vmatpush1.msra.mxu0 0.0
        %550 = vmatprep.subr.mxu0 0.0
        %551 = vmatpush1.msra.mxu0 0.0
        %552 = vmatprep.subr.mxu0 0.0
        %553 = vmatpush1.msra.mxu0 0.0
        %554 = vmatprep.subr.mxu0 0.0
        %555 = vmatpush1.msra.mxu0 0.0
        %556 = vmatprep.subr.mxu0 0.0
        %557 = vmatpush1.msra.mxu0 0.0
        %558 = vmatprep.subr.mxu0 0.0
        %559 = vmatpush1.msra.mxu0 0.0
        %560 = vmatprep.subr.mxu0 0.0
        %561 = vmatpush1.msra.mxu0 0.0
        %562 = vmatprep.subr.mxu0 0.0
        %563 = vmatpush1.msra.mxu0 0.0
        %564 = vmatprep.subr.mxu0 0.0
        %565 = vmatpush1.msra.mxu0 0.0
        %566 = vmatprep.subr.mxu0 0.0
        %567 = vmatpush1.msra.mxu0 0.0
        %568 = vmatprep.subr.mxu0 0.0
        %569 = vmatpush1.msra.mxu0 0.0
        %570 = vmatprep.subr.mxu0 0.0
        %571 = vmatpush1.msra.mxu0 0.0
        %572 = vmatprep.subr.mxu0 0.0
        %573 = vmatpush1.msra.mxu0 0.0
        %574 = vmatprep.subr.mxu0 0.0
        %575 = vmatpush1.msra.mxu0 0.0
        %576 = vmatprep.subr.mxu0 0.0
        %577 = vmatpush1.msra.mxu0 0.0
        %578 = vmatprep.subr.mxu0 0.0
        %579 = vmatpush1.msra.mxu0 0.0
        %580 = vmatprep.subr.mxu0 0.0
        %581 = vmatpush1.msra.mxu0 0.0
        %582 = vmatprep.subr.mxu0 0.0
        %583 = vmatpush1.msra.mxu0 0.0
        %584 = vmatprep.subr.mxu0 0.0
        %585 = vmatpush1.msra.mxu0 0.0
        %586 = vmatprep.subr.mxu0 0.0
        %587 = vmatpush1.msra.mxu0 0.0
        %588 = vmatprep.subr.mxu0 0.0
        %589 = vmatpush1.msra.mxu0 0.0
        %590 = vmatprep.subr.mxu0 0.0
        %591 = vmatpush1.msra.mxu0 0.0
        %592 = vmatprep.subr.mxu0 0.0
        %593 = vmatpush1.msra.mxu0 0.0
        %594 = vmatprep.subr.mxu0 0.0
        %595 = vmatpush1.msra.mxu0 0.0
        %596 = vmatprep.subr.mxu0 0.0
        %597 = vmatpush1.msra.mxu0 0.0
        %598 = vmatprep.subr.mxu0 0.0
        %599 = vmatpush1.msra.mxu0 0.0
        %600 = vmatprep.mubr.f32.mxu0 0.0
        %601 = vmatmul.mubr.f32.gmra.mrb[0].mxu0 %v534
        %v602 = vpop.f32.mrb[0].mxu0
        %v603 = vadd.f32 %v530, %v602
        %v604 = vpop.f32.mrb[0].mxu0
        %605 = vdwg.mxu0
        %v606 = vld [vmem:[#allocation10] sm:$0xff]
        %v607 = vld [vmem:[#allocation10 + $0x8] sm:$0xff]
        %v608 = vld [vmem:[#allocation10 + $0x10] sm:$0xff]
        %v609 = vld [vmem:[#allocation10 + $0x18] sm:$0xff]
        %v610 = vld [vmem:[%s6] sm:$0x1]
        %v612 = vlaneseq
        %v613 = vshrl.u32 %v612, 7
        %v614 = vsub.s32 0, %v613
        %v615 = vrot.slane %v610, %v614
        %v618 = vsel %vm532, %v519, 0
        %620 = vmatprep.subr.mxu0 0.0
        %621 = vmatpush1.msra.mxu0 %v606
        %622 = vmatprep.subr.mxu0 0.0
        %623 = vmatpush1.msra.mxu0 %v607
        %624 = vmatprep.subr.mxu0 0.0
        %625 = vmatpush1.msra.mxu0 %v608
        %626 = vmatprep.subr.mxu0 0.0
        %627 = vmatpush1.msra.mxu0 %v609
        %628 = vmatprep.subr.mxu0 0.0
        %629 = vmatpush1.msra.mxu0 0.0
        %630 = vmatprep.subr.mxu0 0.0
        %631 = vmatpush1.msra.mxu0 0.0
        %632 = vmatprep.subr.mxu0 0.0
        %633 = vmatpush1.msra.mxu0 0.0
        %634 = vmatprep.subr.mxu0 0.0
        %635 = vmatpush1.msra.mxu0 0.0
        %636 = vmatprep.subr.mxu0 0.0
        %637 = vmatpush1.msra.mxu0 0.0
        %638 = vmatprep.subr.mxu0 0.0
        %639 = vmatpush1.msra.mxu0 0.0
        %640 = vmatprep.subr.mxu0 0.0
        %641 = vmatpush1.msra.mxu0 0.0
        %642 = vmatprep.subr.mxu0 0.0
        %643 = vmatpush1.msra.mxu0 0.0
        %644 = vmatprep.subr.mxu0 0.0
        %645 = vmatpush1.msra.mxu0 0.0
        %646 = vmatprep.subr.mxu0 0.0
        %647 = vmatpush1.msra.mxu0 0.0
        %648 = vmatprep.subr.mxu0 0.0
        %649 = vmatpush1.msra.mxu0 0.0
        %650 = vmatprep.subr.mxu0 0.0
        %651 = vmatpush1.msra.mxu0 0.0
        %652 = vmatprep.subr.mxu0 0.0
        %653 = vmatpush1.msra.mxu0 0.0
        %654 = vmatprep.subr.mxu0 0.0
        %655 = vmatpush1.msra.mxu0 0.0
        %656 = vmatprep.subr.mxu0 0.0
        %657 = vmatpush1.msra.mxu0 0.0
        %658 = vmatprep.subr.mxu0 0.0
        %659 = vmatpush1.msra.mxu0 0.0
        %660 = vmatprep.subr.mxu0 0.0
        %661 = vmatpush1.msra.mxu0 0.0
        %662 = vmatprep.subr.mxu0 0.0
        %663 = vmatpush1.msra.mxu0 0.0
        %664 = vmatprep.subr.mxu0 0.0
        %665 = vmatpush1.msra.mxu0 0.0
        %666 = vmatprep.subr.mxu0 0.0
        %667 = vmatpush1.msra.mxu0 0.0
        %668 = vmatprep.subr.mxu0 0.0
        %669 = vmatpush1.msra.mxu0 0.0
        %670 = vmatprep.subr.mxu0 0.0
        %671 = vmatpush1.msra.mxu0 0.0
        %672 = vmatprep.subr.mxu0 0.0
        %673 = vmatpush1.msra.mxu0 0.0
        %674 = vmatprep.subr.mxu0 0.0
        %675 = vmatpush1.msra.mxu0 0.0
        %676 = vmatprep.subr.mxu0 0.0
        %677 = vmatpush1.msra.mxu0 0.0
        %678 = vmatprep.subr.mxu0 0.0
        %679 = vmatpush1.msra.mxu0 0.0
        %680 = vmatprep.subr.mxu0 0.0
        %681 = vmatpush1.msra.mxu0 0.0
        %682 = vmatprep.subr.mxu0 0.0
        %683 = vmatpush1.msra.mxu0 0.0
        %684 = vmatprep.mubr.f32.mxu0 0.0
        %685 = vmatmul.mubr.f32.gmra.mrb[0].mxu0 %v618
        %v686 = vpop.f32.mrb[0].mxu0
        %v687 = vadd.f32 %v615, %v686
        %v688 = vpop.f32.mrb[0].mxu0
        %689 = vdwg.mxu0
        %v690 = vld [vmem:[#allocation11] sm:$0xff]
        %v691 = vld [vmem:[#allocation11 + $0x8] sm:$0xff]
        %v692 = vld [vmem:[#allocation11 + $0x10] sm:$0xff]
        %v693 = vld [vmem:[#allocation11 + $0x18] sm:$0xff]
        %695 = vrot.lane.b32.xlu0 %v603, 96
        %v696 = vpop.permute.xlu0 %695
        %vm697 = vcmask 64512
        %v698 = vsel %vm697, %v603, 0
        %v700 = vsel %vm697, %v696, 0
        %702 = vmatprep.subr.mxu0 0.0
        %703 = vmatpush1.xpose.msra.mxu0 %v700
        %704 = vmatprep.subr.mxu0 0.0
        %705 = vmatpush1.xpose.msra.mxu0 0.0
        %706 = vmatprep.subr.mxu0 0.0
        %707 = vmatpush1.xpose.msra.mxu0 0.0
        %708 = vmatprep.subr.mxu0 0.0
        %709 = vmatpush1.xpose.msra.mxu0 0.0
        %710 = vmatprep.subr.mxu0 0.0
        %711 = vmatpush1.xpose.msra.mxu0 0.0
        %712 = vmatprep.subr.mxu0 0.0
        %713 = vmatpush1.xpose.msra.mxu0 0.0
        %714 = vmatprep.subr.mxu0 0.0
        %715 = vmatpush1.xpose.msra.mxu0 0.0
        %716 = vmatprep.subr.mxu0 0.0
        %717 = vmatpush1.xpose.msra.mxu0 0.0
        %718 = vmatprep.subr.mxu0 0.0
        %719 = vmatpush1.xpose.msra.mxu0 0.0
        %720 = vmatprep.subr.mxu0 0.0
        %721 = vmatpush1.xpose.msra.mxu0 0.0
        %722 = vmatprep.subr.mxu0 0.0
        %723 = vmatpush1.xpose.msra.mxu0 0.0
        %724 = vmatprep.subr.mxu0 0.0
        %725 = vmatpush1.xpose.msra.mxu0 0.0
        %726 = vmatprep.subr.mxu0 0.0
        %727 = vmatpush1.xpose.msra.mxu0 0.0
        %728 = vmatprep.subr.mxu0 0.0
        %729 = vmatpush1.xpose.msra.mxu0 0.0
        %730 = vmatprep.subr.mxu0 0.0
        %731 = vmatpush1.xpose.msra.mxu0 0.0
        %732 = vmatprep.subr.mxu0 0.0
        %733 = vmatpush1.xpose.msra.mxu0 0.0
        %734 = vmatprep.subr.mxu0 0.0
        %735 = vmatpush1.xpose.msra.mxu0 0.0
        %736 = vmatprep.subr.mxu0 0.0
        %737 = vmatpush1.xpose.msra.mxu0 0.0
        %738 = vmatprep.subr.mxu0 0.0
        %739 = vmatpush1.xpose.msra.mxu0 0.0
        %740 = vmatprep.subr.mxu0 0.0
        %741 = vmatpush1.xpose.msra.mxu0 0.0
        %742 = vmatprep.subr.mxu0 0.0
        %743 = vmatpush1.xpose.msra.mxu0 0.0
        %744 = vmatprep.subr.mxu0 0.0
        %745 = vmatpush1.xpose.msra.mxu0 0.0
        %746 = vmatprep.subr.mxu0 0.0
        %747 = vmatpush1.xpose.msra.mxu0 0.0
        %748 = vmatprep.subr.mxu0 0.0
        %749 = vmatpush1.xpose.msra.mxu0 0.0
        %750 = vmatprep.subr.mxu0 0.0
        %751 = vmatpush1.xpose.msra.mxu0 0.0
        %752 = vmatprep.subr.mxu0 0.0
        %753 = vmatpush1.xpose.msra.mxu0 0.0
        %754 = vmatprep.subr.mxu0 0.0
        %755 = vmatpush1.xpose.msra.mxu0 0.0
        %756 = vmatprep.subr.mxu0 0.0
        %757 = vmatpush1.xpose.msra.mxu0 0.0
        %758 = vmatprep.subr.mxu0 0.0
        %759 = vmatpush1.xpose.msra.mxu0 0.0
        %760 = vmatprep.subr.mxu0 0.0
        %761 = vmatpush1.xpose.msra.mxu0 0.0
        %762 = vmatprep.subr.mxu0 0.0
        %763 = vmatpush1.xpose.msra.mxu0 0.0
        %764 = vmatprep.subr.mxu0 0.0
        %765 = vmatpush1.xpose.msra.mxu0 0.0
        %766 = vmatprep.mubr.f32.mxu0 0.0
        %767 = vmatmul.mubr.f32.gmra.mrb[0].mxu0 %v698
        %v768 = vpop.f32.mrb[0].mxu0
        %v769 = vadd.f32 0.0, %v768
        %v770 = vpop.f32.mrb[0].mxu0
        %771 = vdwg.mxu0
        %v772 = vmul.f32 %v769, 0.35355338
        %v773 = vsel %vm697, %v772, -inf
        %774 = vmax.xlane.f32.xlu0 %v773
        %v775 = vpop.xlane.xlu0 %774
        %v776 = vsub.f32 %v772, %v775
        %v777 = vmul.f32 %v776, 1.442695
        %v778 = vpow.pop %v777
        %v779 = vsel %vm697, %v778, 0.0
        %780 = vadd.xlane.f32.xlu0 %v779
        %v781 = vpop.xlane.xlu0 %780
        %v782 = vrcp.pop %v781
        %v783 = vmul.f32 %v778, %v782
        %v785 = vsel %vm697, %v783, 0
        %787 = vmatprep.subr.mxu0 0.0
        %788 = vmatpush1.msra.mxu0 %v687
        %789 = vmatprep.subr.mxu0 0.0
        %790 = vmatpush1.msra.mxu0 0.0
        %791 = vmatprep.subr.mxu0 0.0
        %792 = vmatpush1.msra.mxu0 0.0
        %793 = vmatprep.subr.mxu0 0.0
        %794 = vmatpush1.msra.mxu0 0.0
        %795 = vmatprep.subr.mxu0 0.0
        %796 = vmatpush1.msra.mxu0 0.0
        %797 = vmatprep.subr.mxu0 0.0
        %798 = vmatpush1.msra.mxu0 0.0
        %799 = vmatprep.subr.mxu0 0.0
        %800 = vmatpush1.msra.mxu0 0.0
        %801 = vmatprep.subr.mxu0 0.0
        %802 = vmatpush1.msra.mxu0 0.0
        %803 = vmatprep.subr.mxu0 0.0
        %804 = vmatpush1.msra.mxu0 0.0
        %805 = vmatprep.subr.mxu0 0.0
        %806 = vmatpush1.msra.mxu0 0.0
        %807 = vmatprep.subr.mxu0 0.0
        %808 = vmatpush1.msra.mxu0 0.0
        %809 = vmatprep.subr.mxu0 0.0
        %810 = vmatpush1.msra.mxu0 0.0
        %811 = vmatprep.subr.mxu0 0.0
        %812 = vmatpush1.msra.mxu0 0.0
        %813 = vmatprep.subr.mxu0 0.0
        %814 = vmatpush1.msra.mxu0 0.0
        %815 = vmatprep.subr.mxu0 0.0
        %816 = vmatpush1.msra.mxu0 0.0
        %817 = vmatprep.subr.mxu0 0.0
        %818 = vmatpush1.msra.mxu0 0.0
        %819 = vmatprep.subr.mxu0 0.0
        %820 = vmatpush1.msra.mxu0 0.0
        %821 = vmatprep.subr.mxu0 0.0
        %822 = vmatpush1.msra.mxu0 0.0
        %823 = vmatprep.subr.mxu0 0.0
        %824 = vmatpush1.msra.mxu0 0.0
        %825 = vmatprep.subr.mxu0 0.0
        %826 = vmatpush1.msra.mxu0 0.0
        %827 = vmatprep.subr.mxu0 0.0
        %828 = vmatpush1.msra.mxu0 0.0
        %829 = vmatprep.subr.mxu0 0.0
        %830 = vmatpush1.msra.mxu0 0.0
        %831 = vmatprep.subr.mxu0 0.0
        %832 = vmatpush1.msra.mxu0 0.0
        %833 = vmatprep.subr.mxu0 0.0
        %834 = vmatpush1.msra.mxu0 0.0
        %835 = vmatprep.subr.mxu0 0.0
        %836 = vmatpush1.msra.mxu0 0.0
        %837 = vmatprep.subr.mxu0 0.0
        %838 = vmatpush1.msra.mxu0 0.0
        %839 = vmatprep.subr.mxu0 0.0
        %840 = vmatpush1.msra.mxu0 0.0
        %841 = vmatprep.subr.mxu0 0.0
        %842 = vmatpush1.msra.mxu0 0.0
        %843 = vmatprep.subr.mxu0 0.0
        %844 = vmatpush1.msra.mxu0 0.0
        %845 = vmatprep.subr.mxu0 0.0
        %846 = vmatpush1.msra.mxu0 0.0
        %847 = vmatprep.subr.mxu0 0.0
        %848 = vmatpush1.msra.mxu0 0.0
        %849 = vmatprep.subr.mxu0 0.0
        %850 = vmatpush1.msra.mxu0 0.0
        %851 = vmatprep.mubr.f32.mxu0 0.0
        %852 = vmatmul.mubr.f32.gmra.mrb[0].mxu0 %v785
        %v853 = vpop.f32.mrb[0].mxu0
        %v854 = vadd.f32 0.0, %v853
        %v855 = vpop.f32.mrb[0].mxu0
        %856 = vdwg.mxu0
        %857 = vrot.lane.b32.xlu0 %v603, 120
        %v858 = vpop.permute.xlu0 %857
        %859 = vrot.lane.b32.xlu0 %v603, 88
        %v860 = vpop.permute.xlu0 %859
        %v861 = vsel %vm697, %v858, 0
        %v863 = vsel %vm697, %v860, 0
        %865 = vmatprep.subr.mxu0 0.0
        %866 = vmatpush1.xpose.msra.mxu0 %v863
        %867 = vmatprep.subr.mxu0 0.0
        %868 = vmatpush1.xpose.msra.mxu0 0.0
        %869 = vmatprep.subr.mxu0 0.0
        %870 = vmatpush1.xpose.msra.mxu0 0.0
        %871 = vmatprep.subr.mxu0 0.0
        %872 = vmatpush1.xpose.msra.mxu0 0.0
        %873 = vmatprep.subr.mxu0 0.0
        %874 = vmatpush1.xpose.msra.mxu0 0.0
        %875 = vmatprep.subr.mxu0 0.0
        %876 = vmatpush1.xpose.msra.mxu0 0.0
        %877 = vmatprep.subr.mxu0 0.0
        %878 = vmatpush1.xpose.msra.mxu0 0.0
        %879 = vmatprep.subr.mxu0 0.0
        %880 = vmatpush1.xpose.msra.mxu0 0.0
        %881 = vmatprep.subr.mxu0 0.0
        %882 = vmatpush1.xpose.msra.mxu0 0.0
        %883 = vmatprep.subr.mxu0 0.0
        %884 = vmatpush1.xpose.msra.mxu0 0.0
        %885 = vmatprep.subr.mxu0 0.0
        %886 = vmatpush1.xpose.msra.mxu0 0.0
        %887 = vmatprep.subr.mxu0 0.0
        %888 = vmatpush1.xpose.msra.mxu0 0.0
        %889 = vmatprep.subr.mxu0 0.0
        %890 = vmatpush1.xpose.msra.mxu0 0.0
        %891 = vmatprep.subr.mxu0 0.0
        %892 = vmatpush1.xpose.msra.mxu0 0.0
        %893 = vmatprep.subr.mxu0 0.0
        %894 = vmatpush1.xpose.msra.mxu0 0.0
        %895 = vmatprep.subr.mxu0 0.0
        %896 = vmatpush1.xpose.msra.mxu0 0.0
        %897 = vmatprep.subr.mxu0 0.0
        %898 = vmatpush1.xpose.msra.mxu0 0.0
        %899 = vmatprep.subr.mxu0 0.0
        %900 = vmatpush1.xpose.msra.mxu0 0.0
        %901 = vmatprep.subr.mxu0 0.0
        %902 = vmatpush1.xpose.msra.mxu0 0.0
        %903 = vmatprep.subr.mxu0 0.0
        %904 = vmatpush1.xpose.msra.mxu0 0.0
        %905 = vmatprep.subr.mxu0 0.0
        %906 = vmatpush1.xpose.msra.mxu0 0.0
        %907 = vmatprep.subr.mxu0 0.0
        %908 = vmatpush1.xpose.msra.mxu0 0.0
        %909 = vmatprep.subr.mxu0 0.0
        %910 = vmatpush1.xpose.msra.mxu0 0.0
        %911 = vmatprep.subr.mxu0 0.0
        %912 = vmatpush1.xpose.msra.mxu0 0.0
        %913 = vmatprep.subr.mxu0 0.0
        %914 = vmatpush1.xpose.msra.mxu0 0.0
        %915 = vmatprep.subr.mxu0 0.0
        %916 = vmatpush1.xpose.msra.mxu0 0.0
        %917 = vmatprep.subr.mxu0 0.0
        %918 = vmatpush1.xpose.msra.mxu0 0.0
        %919 = vmatprep.subr.mxu0 0.0
        %920 = vmatpush1.xpose.msra.mxu0 0.0
        %921 = vmatprep.subr.mxu0 0.0
        %922 = vmatpush1.xpose.msra.mxu0 0.0
        %923 = vmatprep.subr.mxu0 0.0
        %924 = vmatpush1.xpose.msra.mxu0 0.0
        %925 = vmatprep.subr.mxu0 0.0
        %926 = vmatpush1.xpose.msra.mxu0 0.0
        %927 = vmatprep.subr.mxu0 0.0
        %928 = vmatpush1.xpose.msra.mxu0 0.0
        %929 = vmatprep.mubr.f32.mxu0 0.0
        %930 = vmatmul.mubr.f32.gmra.mrb[0].mxu0 %v861
        %v931 = vpop.f32.mrb[0].mxu0
        %v932 = vadd.f32 0.0, %v931
        %v933 = vpop.f32.mrb[0].mxu0
        %934 = vdwg.mxu0
        %v935 = vmul.f32 %v932, 0.35355338
        %v936 = vsel %vm697, %v935, -inf
        %937 = vmax.xlane.f32.xlu0 %v936
        %v938 = vpop.xlane.xlu0 %937
        %v939 = vsub.f32 %v935, %v938
        %v940 = vmul.f32 %v939, 1.442695
        %v941 = vpow.pop %v940
        %v942 = vsel %vm697, %v941, 0.0
        %943 = vadd.xlane.f32.xlu0 %v942
        %v944 = vpop.xlane.xlu0 %943
        %v945 = vrcp.pop %v944
        %v946 = vmul.f32 %v941, %v945
        %948 = vrot.lane.b32.xlu0 %v687, 120
        %v949 = vpop.permute.xlu0 %948
        %v952 = vsel %vm697, %v946, 0
        %954 = vmatprep.subr.mxu0 0.0
        %955 = vmatpush1.msra.mxu0 %v949
        %956 = vmatprep.subr.mxu0 0.0
        %957 = vmatpush1.msra.mxu0 0.0
        %958 = vmatprep.subr.mxu0 0.0
        %959 = vmatpush1.msra.mxu0 0.0
        %960 = vmatprep.subr.mxu0 0.0
        %961 = vmatpush1.msra.mxu0 0.0
        %962 = vmatprep.subr.mxu0 0.0
        %963 = vmatpush1.msra.mxu0 0.0
        %964 = vmatprep.subr.mxu0 0.0
        %965 = vmatpush1.msra.mxu0 0.0
        %966 = vmatprep.subr.mxu0 0.0
        %967 = vmatpush1.msra.mxu0 0.0
        %968 = vmatprep.subr.mxu0 0.0
        %969 = vmatpush1.msra.mxu0 0.0
        %970 = vmatprep.subr.mxu0 0.0
        %971 = vmatpush1.msra.mxu0 0.0
        %972 = vmatprep.subr.mxu0 0.0
        %973 = vmatpush1.msra.mxu0 0.0
        %974 = vmatprep.subr.mxu0 0.0
        %975 = vmatpush1.msra.mxu0 0.0
        %976 = vmatprep.subr.mxu0 0.0
        %977 = vmatpush1.msra.mxu0 0.0
        %978 = vmatprep.subr.mxu0 0.0
        %979 = vmatpush1.msra.mxu0 0.0
        %980 = vmatprep.subr.mxu0 0.0
        %981 = vmatpush1.msra.mxu0 0.0
        %982 = vmatprep.subr.mxu0 0.0
        %983 = vmatpush1.msra.mxu0 0.0
        %984 = vmatprep.subr.mxu0 0.0
        %985 = vmatpush1.msra.mxu0 0.0
        %986 = vmatprep.subr.mxu0 0.0
        %987 = vmatpush1.msra.mxu0 0.0
        %988 = vmatprep.subr.mxu0 0.0
        %989 = vmatpush1.msra.mxu0 0.0
        %990 = vmatprep.subr.mxu0 0.0
        %991 = vmatpush1.msra.mxu0 0.0
        %992 = vmatprep.subr.mxu0 0.0
        %993 = vmatpush1.msra.mxu0 0.0
        %994 = vmatprep.subr.mxu0 0.0
        %995 = vmatpush1.msra.mxu0 0.0
        %996 = vmatprep.subr.mxu0 0.0
        %997 = vmatpush1.msra.mxu0 0.0
        %998 = vmatprep.subr.mxu0 0.0
        %999 = vmatpush1.msra.mxu0 0.0
        %1000 = vmatprep.subr.mxu0 0.0
        %1001 = vmatpush1.msra.mxu0 0.0
        %1002 = vmatprep.subr.mxu0 0.0
        %1003 = vmatpush1.msra.mxu0 0.0
        %1004 = vmatprep.subr.mxu0 0.0
        %1005 = vmatpush1.msra.mxu0 0.0
        %1006 = vmatprep.subr.mxu0 0.0
        %1007 = vmatpush1.msra.mxu0 0.0
        %1008 = vmatprep.subr.mxu0 0.0
        %1009 = vmatpush1.msra.mxu0 0.0
        %1010 = vmatprep.subr.mxu0 0.0
        %1011 = vmatpush1.msra.mxu0 0.0
        %1012 = vmatprep.subr.mxu0 0.0
        %1013 = vmatpush1.msra.mxu0 0.0
        %1014 = vmatprep.subr.mxu0 0.0
        %1015 = vmatpush1.msra.mxu0 0.0
        %1016 = vmatprep.subr.mxu0 0.0
        %1017 = vmatpush1.msra.mxu0 0.0
        %1018 = vmatprep.mubr.f32.mxu0 0.0
        %1019 = vmatmul.mubr.f32.gmra.mrb[0].mxu0 %v952
        %v1020 = vpop.f32.mrb[0].mxu0
        %v1021 = vadd.f32 0.0, %v1020
        %v1022 = vpop.f32.mrb[0].mxu0
        %1023 = vdwg.mxu0
        %v1025 = vsel %vm697, %v1021, 0
        %1027 = vmatprep.subr.mxu0 0.0
        %1028 = vmatpush1.msra.mxu0 %v691
        %1029 = vmatprep.subr.mxu0 0.0
        %1030 = vmatpush1.msra.mxu0 0.0
        %1031 = vmatprep.subr.mxu0 0.0
        %1032 = vmatpush1.msra.mxu0 0.0
        %1033 = vmatprep.subr.mxu0 0.0
        %1034 = vmatpush1.msra.mxu0 0.0
        %1035 = vmatprep.subr.mxu0 0.0
        %1036 = vmatpush1.msra.mxu0 0.0
        %1037 = vmatprep.subr.mxu0 0.0
        %1038 = vmatpush1.msra.mxu0 0.0
        %1039 = vmatprep.subr.mxu0 0.0
        %1040 = vmatpush1.msra.mxu0 0.0
        %1041 = vmatprep.subr.mxu0 0.0
        %1042 = vmatpush1.msra.mxu0 0.0
        %1043 = vmatprep.subr.mxu0 0.0
        %1044 = vmatpush1.msra.mxu0 0.0
        %1045 = vmatprep.subr.mxu0 0.0
        %1046 = vmatpush1.msra.mxu0 0.0
        %1047 = vmatprep.subr.mxu0 0.0
        %1048 = vmatpush1.msra.mxu0 0.0
        %1049 = vmatprep.subr.mxu0 0.0
        %1050 = vmatpush1.msra.mxu0 0.0
        %1051 = vmatprep.subr.mxu0 0.0
        %1052 = vmatpush1.msra.mxu0 0.0
        %1053 = vmatprep.subr.mxu0 0.0
        %1054 = vmatpush1.msra.mxu0 0.0
        %1055 = vmatprep.subr.mxu0 0.0
        %1056 = vmatpush1.msra.mxu0 0.0
        %1057 = vmatprep.subr.mxu0 0.0
        %1058 = vmatpush1.msra.mxu0 0.0
        %1059 = vmatprep.subr.mxu0 0.0
        %1060 = vmatpush1.msra.mxu0 0.0
        %1061 = vmatprep.subr.mxu0 0.0
        %1062 = vmatpush1.msra.mxu0 0.0
        %1063 = vmatprep.subr.mxu0 0.0
        %1064 = vmatpush1.msra.mxu0 0.0
        %1065 = vmatprep.subr.mxu0 0.0
        %1066 = vmatpush1.msra.mxu0 0.0
        %1067 = vmatprep.subr.mxu0 0.0
        %1068 = vmatpush1.msra.mxu0 0.0
        %1069 = vmatprep.subr.mxu0 0.0
        %1070 = vmatpush1.msra.mxu0 0.0
        %1071 = vmatprep.subr.mxu0 0.0
        %1072 = vmatpush1.msra.mxu0 0.0
        %1073 = vmatprep.subr.mxu0 0.0
        %1074 = vmatpush1.msra.mxu0 0.0
        %1075 = vmatprep.subr.mxu0 0.0
        %1076 = vmatpush1.msra.mxu0 0.0
        %1077 = vmatprep.subr.mxu0 0.0
        %1078 = vmatpush1.msra.mxu0 0.0
        %1079 = vmatprep.subr.mxu0 0.0
        %1080 = vmatpush1.msra.mxu0 0.0
        %1081 = vmatprep.subr.mxu0 0.0
        %1082 = vmatpush1.msra.mxu0 0.0
        %1083 = vmatprep.subr.mxu0 0.0
        %1084 = vmatpush1.msra.mxu0 0.0
        %1085 = vmatprep.subr.mxu0 0.0
        %1086 = vmatpush1.msra.mxu0 0.0
        %1087 = vmatprep.subr.mxu0 0.0
        %1088 = vmatpush1.msra.mxu0 0.0
        %1089 = vmatprep.subr.mxu0 0.0
        %1090 = vmatpush1.msra.mxu0 0.0
        %1091 = vmatprep.mubr.f32.mxu0 0.0
        %1092 = vmatmul.mubr.f32.gmra.mrb[0].mxu0 %v1025
        %v1093 = vpop.f32.mrb[0].mxu0
        %v1094 = vadd.f32 0.0, %v1093
        %v1095 = vpop.f32.mrb[0].mxu0
        %1096 = vdwg.mxu0
        %v1098 = vsel %vm697, %v854, 0
        %1100 = vmatprep.subr.mxu0 0.0
        %1101 = vmatpush1.msra.mxu0 %v690
        %1102 = vmatprep.subr.mxu0 0.0
        %1103 = vmatpush1.msra.mxu0 0.0
        %1104 = vmatprep.subr.mxu0 0.0
        %1105 = vmatpush1.msra.mxu0 0.0
        %1106 = vmatprep.subr.mxu0 0.0
        %1107 = vmatpush1.msra.mxu0 0.0
        %1108 = vmatprep.subr.mxu0 0.0
        %1109 = vmatpush1.msra.mxu0 0.0
        %1110 = vmatprep.subr.mxu0 0.0
        %1111 = vmatpush1.msra.mxu0 0.0
        %1112 = vmatprep.subr.mxu0 0.0
        %1113 = vmatpush1.msra.mxu0 0.0
        %1114 = vmatprep.subr.mxu0 0.0
        %1115 = vmatpush1.msra.mxu0 0.0
        %1116 = vmatprep.subr.mxu0 0.0
        %1117 = vmatpush1.msra.mxu0 0.0
        %1118 = vmatprep.subr.mxu0 0.0
        %1119 = vmatpush1.msra.mxu0 0.0
        %1120 = vmatprep.subr.mxu0 0.0
        %1121 = vmatpush1.msra.mxu0 0.0
        %1122 = vmatprep.subr.mxu0 0.0
        %1123 = vmatpush1.msra.mxu0 0.0
        %1124 = vmatprep.subr.mxu0 0.0
        %1125 = vmatpush1.msra.mxu0 0.0
        %1126 = vmatprep.subr.mxu0 0.0
        %1127 = vmatpush1.msra.mxu0 0.0
        %1128 = vmatprep.subr.mxu0 0.0
        %1129 = vmatpush1.msra.mxu0 0.0
        %1130 = vmatprep.subr.mxu0 0.0
        %1131 = vmatpush1.msra.mxu0 0.0
        %1132 = vmatprep.subr.mxu0 0.0
        %1133 = vmatpush1.msra.mxu0 0.0
        %1134 = vmatprep.subr.mxu0 0.0
        %1135 = vmatpush1.msra.mxu0 0.0
        %1136 = vmatprep.subr.mxu0 0.0
        %1137 = vmatpush1.msra.mxu0 0.0
        %1138 = vmatprep.subr.mxu0 0.0
        %1139 = vmatpush1.msra.mxu0 0.0
        %1140 = vmatprep.subr.mxu0 0.0
        %1141 = vmatpush1.msra.mxu0 0.0
        %1142 = vmatprep.subr.mxu0 0.0
        %1143 = vmatpush1.msra.mxu0 0.0
        %1144 = vmatprep.subr.mxu0 0.0
        %1145 = vmatpush1.msra.mxu0 0.0
        %1146 = vmatprep.subr.mxu0 0.0
        %1147 = vmatpush1.msra.mxu0 0.0
        %1148 = vmatprep.subr.mxu0 0.0
        %1149 = vmatpush1.msra.mxu0 0.0
        %1150 = vmatprep.subr.mxu0 0.0
        %1151 = vmatpush1.msra.mxu0 0.0
        %1152 = vmatprep.subr.mxu0 0.0
        %1153 = vmatpush1.msra.mxu0 0.0
        %1154 = vmatprep.subr.mxu0 0.0
        %1155 = vmatpush1.msra.mxu0 0.0
        %1156 = vmatprep.subr.mxu0 0.0
        %1157 = vmatpush1.msra.mxu0 0.0
        %1158 = vmatprep.subr.mxu0 0.0
        %1159 = vmatpush1.msra.mxu0 0.0
        %1160 = vmatprep.subr.mxu0 0.0
        %1161 = vmatpush1.msra.mxu0 0.0
        %1162 = vmatprep.subr.mxu0 0.0
        %1163 = vmatpush1.msra.mxu0 0.0
        %1164 = vmatprep.mubr.f32.mxu0 0.0
        %1165 = vmatmul.mubr.f32.gmra.mrb[0].mxu0 %v1098
        %v1166 = vpop.f32.mrb[0].mxu0
        %v1167 = vadd.f32 %v1094, %v1166
        %v1168 = vpop.f32.mrb[0].mxu0
        %1169 = vdwg.mxu0
        %1170 = vrot.lane.b32.xlu0 %v603, 112
        %v1171 = vpop.permute.xlu0 %1170
        %1172 = vrot.lane.b32.xlu0 %v603, 80
        %v1173 = vpop.permute.xlu0 %1172
        %v1174 = vsel %vm697, %v1171, 0
        %v1176 = vsel %vm697, %v1173, 0
        %1178 = vmatprep.subr.mxu0 0.0
        %1179 = vmatpush1.xpose.msra.mxu0 %v1176
        %1180 = vmatprep.subr.mxu0 0.0
        %1181 = vmatpush1.xpose.msra.mxu0 0.0
        %1182 = vmatprep.subr.mxu0 0.0
        %1183 = vmatpush1.xpose.msra.mxu0 0.0
        %1184 = vmatprep.subr.mxu0 0.0
        %1185 = vmatpush1.xpose.msra.mxu0 0.0
        %1186 = vmatprep.subr.mxu0 0.0
        %1187 = vmatpush1.xpose.msra.mxu0 0.0
        %1188 = vmatprep.subr.mxu0 0.0
        %1189 = vmatpush1.xpose.msra.mxu0 0.0
        %1190 = vmatprep.subr.mxu0 0.0
        %1191 = vmatpush1.xpose.msra.mxu0 0.0
        %1192 = vmatprep.subr.mxu0 0.0
        %1193 = vmatpush1.xpose.msra.mxu0 0.0
        %1194 = vmatprep.subr.mxu0 0.0
        %1195 = vmatpush1.xpose.msra.mxu0 0.0
        %1196 = vmatprep.subr.mxu0 0.0
        %1197 = vmatpush1.xpose.msra.mxu0 0.0
        %1198 = vmatprep.subr.mxu0 0.0
        %1199 = vmatpush1.xpose.msra.mxu0 0.0
        %1200 = vmatprep.subr.mxu0 0.0
        %1201 = vmatpush1.xpose.msra.mxu0 0.0
        %1202 = vmatprep.subr.mxu0 0.0
        %1203 = vmatpush1.xpose.msra.mxu0 0.0
        %1204 = vmatprep.subr.mxu0 0.0
        %1205 = vmatpush1.xpose.msra.mxu0 0.0
        %1206 = vmatprep.subr.mxu0 0.0
        %1207 = vmatpush1.xpose.msra.mxu0 0.0
        %1208 = vmatprep.subr.mxu0 0.0
        %1209 = vmatpush1.xpose.msra.mxu0 0.0
        %1210 = vmatprep.subr.mxu0 0.0
        %1211 = vmatpush1.xpose.msra.mxu0 0.0
        %1212 = vmatprep.subr.mxu0 0.0
        %1213 = vmatpush1.xpose.msra.mxu0 0.0
        %1214 = vmatprep.subr.mxu0 0.0
        %1215 = vmatpush1.xpose.msra.mxu0 0.0
        %1216 = vmatprep.subr.mxu0 0.0
        %1217 = vmatpush1.xpose.msra.mxu0 0.0
        %1218 = vmatprep.subr.mxu0 0.0
        %1219 = vmatpush1.xpose.msra.mxu0 0.0
        %1220 = vmatprep.subr.mxu0 0.0
        %1221 = vmatpush1.xpose.msra.mxu0 0.0
        %1222 = vmatprep.subr.mxu0 0.0
        %1223 = vmatpush1.xpose.msra.mxu0 0.0
        %1224 = vmatprep.subr.mxu0 0.0
        %1225 = vmatpush1.xpose.msra.mxu0 0.0
        %1226 = vmatprep.subr.mxu0 0.0
        %1227 = vmatpush1.xpose.msra.mxu0 0.0
        %1228 = vmatprep.subr.mxu0 0.0
        %1229 = vmatpush1.xpose.msra.mxu0 0.0
        %1230 = vmatprep.subr.mxu0 0.0
        %1231 = vmatpush1.xpose.msra.mxu0 0.0
        %1232 = vmatprep.subr.mxu0 0.0
        %1233 = vmatpush1.xpose.msra.mxu0 0.0
        %1234 = vmatprep.subr.mxu0 0.0
        %1235 = vmatpush1.xpose.msra.mxu0 0.0
        %1236 = vmatprep.subr.mxu0 0.0
        %1237 = vmatpush1.xpose.msra.mxu0 0.0
        %1238 = vmatprep.subr.mxu0 0.0
        %1239 = vmatpush1.xpose.msra.mxu0 0.0
        %1240 = vmatprep.subr.mxu0 0.0
        %1241 = vmatpush1.xpose.msra.mxu0 0.0
        %1242 = vmatprep.mubr.f32.mxu0 0.0
        %1243 = vmatmul.mubr.f32.gmra.mrb[0].mxu0 %v1174
        %v1244 = vpop.f32.mrb[0].mxu0
        %v1245 = vadd.f32 0.0, %v1244
        %v1246 = vpop.f32.mrb[0].mxu0
        %1247 = vdwg.mxu0
        %v1248 = vmul.f32 %v1245, 0.35355338
        %v1249 = vsel %vm697, %v1248, -inf
        %1250 = vmax.xlane.f32.xlu0 %v1249
        %v1251 = vpop.xlane.xlu0 %1250
        %v1252 = vsub.f32 %v1248, %v1251
        %v1253 = vmul.f32 %v1252, 1.442695
        %v1254 = vpow.pop %v1253
        %v1255 = vsel %vm697, %v1254, 0.0
        %1256 = vadd.xlane.f32.xlu0 %v1255
        %v1257 = vpop.xlane.xlu0 %1256
        %v1258 = vrcp.pop %v1257
        %v1259 = vmul.f32 %v1254, %v1258
        %1260 = vrot.lane.b32.xlu0 %v687, 112
        %v1261 = vpop.permute.xlu0 %1260
        %v1264 = vsel %vm697, %v1259, 0
        %1266 = vmatprep.subr.mxu0 0.0
        %1267 = vmatpush1.msra.mxu0 %v1261
        %1268 = vmatprep.subr.mxu0 0.0
        %1269 = vmatpush1.msra.mxu0 0.0
        %1270 = vmatprep.subr.mxu0 0.0
        %1271 = vmatpush1.msra.mxu0 0.0
        %1272 = vmatprep.subr.mxu0 0.0
        %1273 = vmatpush1.msra.mxu0 0.0
        %1274 = vmatprep.subr.mxu0 0.0
        %1275 = vmatpush1.msra.mxu0 0.0
        %1276 = vmatprep.subr.mxu0 0.0
        %1277 = vmatpush1.msra.mxu0 0.0
        %1278 = vmatprep.subr.mxu0 0.0
        %1279 = vmatpush1.msra.mxu0 0.0
        %1280 = vmatprep.subr.mxu0 0.0
        %1281 = vmatpush1.msra.mxu0 0.0
        %1282 = vmatprep.subr.mxu0 0.0
        %1283 = vmatpush1.msra.mxu0 0.0
        %1284 = vmatprep.subr.mxu0 0.0
        %1285 = vmatpush1.msra.mxu0 0.0
        %1286 = vmatprep.subr.mxu0 0.0
        %1287 = vmatpush1.msra.mxu0 0.0
        %1288 = vmatprep.subr.mxu0 0.0
        %1289 = vmatpush1.msra.mxu0 0.0
        %1290 = vmatprep.subr.mxu0 0.0
        %1291 = vmatpush1.msra.mxu0 0.0
        %1292 = vmatprep.subr.mxu0 0.0
        %1293 = vmatpush1.msra.mxu0 0.0
        %1294 = vmatprep.subr.mxu0 0.0
        %1295 = vmatpush1.msra.mxu0 0.0
        %1296 = vmatprep.subr.mxu0 0.0
        %1297 = vmatpush1.msra.mxu0 0.0
        %1298 = vmatprep.subr.mxu0 0.0
        %1299 = vmatpush1.msra.mxu0 0.0
        %1300 = vmatprep.subr.mxu0 0.0
        %1301 = vmatpush1.msra.mxu0 0.0
        %1302 = vmatprep.subr.mxu0 0.0
        %1303 = vmatpush1.msra.mxu0 0.0
        %1304 = vmatprep.subr.mxu0 0.0
        %1305 = vmatpush1.msra.mxu0 0.0
        %1306 = vmatprep.subr.mxu0 0.0
        %1307 = vmatpush1.msra.mxu0 0.0
        %1308 = vmatprep.subr.mxu0 0.0
        %1309 = vmatpush1.msra.mxu0 0.0
        %1310 = vmatprep.subr.mxu0 0.0
        %1311 = vmatpush1.msra.mxu0 0.0
        %1312 = vmatprep.subr.mxu0 0.0
        %1313 = vmatpush1.msra.mxu0 0.0
        %1314 = vmatprep.subr.mxu0 0.0
        %1315 = vmatpush1.msra.mxu0 0.0
        %1316 = vmatprep.subr.mxu0 0.0
        %1317 = vmatpush1.msra.mxu0 0.0
        %1318 = vmatprep.subr.mxu0 0.0
        %1319 = vmatpush1.msra.mxu0 0.0
        %1320 = vmatprep.subr.mxu0 0.0
        %1321 = vmatpush1.msra.mxu0 0.0
        %1322 = vmatprep.subr.mxu0 0.0
        %1323 = vmatpush1.msra.mxu0 0.0
        %1324 = vmatprep.subr.mxu0 0.0
        %1325 = vmatpush1.msra.mxu0 0.0
        %1326 = vmatprep.subr.mxu0 0.0
        %1327 = vmatpush1.msra.mxu0 0.0
        %1328 = vmatprep.subr.mxu0 0.0
        %1329 = vmatpush1.msra.mxu0 0.0
        %1330 = vmatprep.mubr.f32.mxu0 0.0
        %1331 = vmatmul.mubr.f32.gmra.mrb[0].mxu0 %v1264
        %v1332 = vpop.f32.mrb[0].mxu0
        %v1333 = vadd.f32 0.0, %v1332
        %v1334 = vpop.f32.mrb[0].mxu0
        %1335 = vdwg.mxu0
        %v1337 = vsel %vm697, %v1333, 0
        %1339 = vmatprep.subr.mxu0 0.0
        %1340 = vmatpush1.msra.mxu0 %v692
        %1341 = vmatprep.subr.mxu0 0.0
        %1342 = vmatpush1.msra.mxu0 0.0
        %1343 = vmatprep.subr.mxu0 0.0
        %1344 = vmatpush1.msra.mxu0 0.0
        %1345 = vmatprep.subr.mxu0 0.0
        %1346 = vmatpush1.msra.mxu0 0.0
        %1347 = vmatprep.subr.mxu0 0.0
        %1348 = vmatpush1.msra.mxu0 0.0
        %1349 = vmatprep.subr.mxu0 0.0
        %1350 = vmatpush1.msra.mxu0 0.0
        %1351 = vmatprep.subr.mxu0 0.0
        %1352 = vmatpush1.msra.mxu0 0.0
        %1353 = vmatprep.subr.mxu0 0.0
        %1354 = vmatpush1.msra.mxu0 0.0
        %1355 = vmatprep.subr.mxu0 0.0
        %1356 = vmatpush1.msra.mxu0 0.0
        %1357 = vmatprep.subr.mxu0 0.0
        %1358 = vmatpush1.msra.mxu0 0.0
        %1359 = vmatprep.subr.mxu0 0.0
        %1360 = vmatpush1.msra.mxu0 0.0
        %1361 = vmatprep.subr.mxu0 0.0
        %1362 = vmatpush1.msra.mxu0 0.0
        %1363 = vmatprep.subr.mxu0 0.0
        %1364 = vmatpush1.msra.mxu0 0.0
        %1365 = vmatprep.subr.mxu0 0.0
        %1366 = vmatpush1.msra.mxu0 0.0
        %1367 = vmatprep.subr.mxu0 0.0
        %1368 = vmatpush1.msra.mxu0 0.0
        %1369 = vmatprep.subr.mxu0 0.0
        %1370 = vmatpush1.msra.mxu0 0.0
        %1371 = vmatprep.subr.mxu0 0.0
        %1372 = vmatpush1.msra.mxu0 0.0
        %1373 = vmatprep.subr.mxu0 0.0
        %1374 = vmatpush1.msra.mxu0 0.0
        %1375 = vmatprep.subr.mxu0 0.0
        %1376 = vmatpush1.msra.mxu0 0.0
        %1377 = vmatprep.subr.mxu0 0.0
        %1378 = vmatpush1.msra.mxu0 0.0
        %1379 = vmatprep.subr.mxu0 0.0
        %1380 = vmatpush1.msra.mxu0 0.0
        %1381 = vmatprep.subr.mxu0 0.0
        %1382 = vmatpush1.msra.mxu0 0.0
        %1383 = vmatprep.subr.mxu0 0.0
        %1384 = vmatpush1.msra.mxu0 0.0
        %1385 = vmatprep.subr.mxu0 0.0
        %1386 = vmatpush1.msra.mxu0 0.0
        %1387 = vmatprep.subr.mxu0 0.0
        %1388 = vmatpush1.msra.mxu0 0.0
        %1389 = vmatprep.subr.mxu0 0.0
        %1390 = vmatpush1.msra.mxu0 0.0
        %1391 = vmatprep.subr.mxu0 0.0
        %1392 = vmatpush1.msra.mxu0 0.0
        %1393 = vmatprep.subr.mxu0 0.0
        %1394 = vmatpush1.msra.mxu0 0.0
        %1395 = vmatprep.subr.mxu0 0.0
        %1396 = vmatpush1.msra.mxu0 0.0
        %1397 = vmatprep.subr.mxu0 0.0
        %1398 = vmatpush1.msra.mxu0 0.0
        %1399 = vmatprep.subr.mxu0 0.0
        %1400 = vmatpush1.msra.mxu0 0.0
        %1401 = vmatprep.subr.mxu0 0.0
        %1402 = vmatpush1.msra.mxu0 0.0
        %1403 = vmatprep.mubr.f32.mxu0 0.0
        %1404 = vmatmul.mubr.f32.gmra.mrb[0].mxu0 %v1337
        %v1405 = vpop.f32.mrb[0].mxu0
        %v1406 = vadd.f32 0.0, %v1405
        %v1407 = vpop.f32.mrb[0].mxu0
        %1408 = vdwg.mxu0
        %v1409 = vadd.f32 %v1167, %v1406
        %1410 = vrot.lane.b32.xlu0 %v603, 104
        %v1411 = vpop.permute.xlu0 %1410
        %1412 = vrot.lane.b32.xlu0 %v603, 72
        %v1413 = vpop.permute.xlu0 %1412
        %v1414 = vsel %vm697, %v1411, 0
        %v1416 = vsel %vm697, %v1413, 0
        %1418 = vmatprep.subr.mxu0 0.0
        %1419 = vmatpush1.xpose.msra.mxu0 %v1416
        %1420 = vmatprep.subr.mxu0 0.0
        %1421 = vmatpush1.xpose.msra.mxu0 0.0
        %1422 = vmatprep.subr.mxu0 0.0
        %1423 = vmatpush1.xpose.msra.mxu0 0.0
        %1424 = vmatprep.subr.mxu0 0.0
        %1425 = vmatpush1.xpose.msra.mxu0 0.0
        %1426 = vmatprep.subr.mxu0 0.0
        %1427 = vmatpush1.xpose.msra.mxu0 0.0
        %1428 = vmatprep.subr.mxu0 0.0
        %1429 = vmatpush1.xpose.msra.mxu0 0.0
        %1430 = vmatprep.subr.mxu0 0.0
        %1431 = vmatpush1.xpose.msra.mxu0 0.0
        %1432 = vmatprep.subr.mxu0 0.0
        %1433 = vmatpush1.xpose.msra.mxu0 0.0
        %1434 = vmatprep.subr.mxu0 0.0
        %1435 = vmatpush1.xpose.msra.mxu0 0.0
        %1436 = vmatprep.subr.mxu0 0.0
        %1437 = vmatpush1.xpose.msra.mxu0 0.0
        %1438 = vmatprep.subr.mxu0 0.0
        %1439 = vmatpush1.xpose.msra.mxu0 0.0
        %1440 = vmatprep.subr.mxu0 0.0
        %1441 = vmatpush1.xpose.msra.mxu0 0.0
        %1442 = vmatprep.subr.mxu0 0.0
        %1443 = vmatpush1.xpose.msra.mxu0 0.0
        %1444 = vmatprep.subr.mxu0 0.0
        %1445 = vmatpush1.xpose.msra.mxu0 0.0
        %1446 = vmatprep.subr.mxu0 0.0
        %1447 = vmatpush1.xpose.msra.mxu0 0.0
        %1448 = vmatprep.subr.mxu0 0.0
        %1449 = vmatpush1.xpose.msra.mxu0 0.0
        %1450 = vmatprep.subr.mxu0 0.0
        %1451 = vmatpush1.xpose.msra.mxu0 0.0
        %1452 = vmatprep.subr.mxu0 0.0
        %1453 = vmatpush1.xpose.msra.mxu0 0.0
        %1454 = vmatprep.subr.mxu0 0.0
        %1455 = vmatpush1.xpose.msra.mxu0 0.0
        %1456 = vmatprep.subr.mxu0 0.0
        %1457 = vmatpush1.xpose.msra.mxu0 0.0
        %1458 = vmatprep.subr.mxu0 0.0
        %1459 = vmatpush1.xpose.msra.mxu0 0.0
        %1460 = vmatprep.subr.mxu0 0.0
        %1461 = vmatpush1.xpose.msra.mxu0 0.0
        %1462 = vmatprep.subr.mxu0 0.0
        %1463 = vmatpush1.xpose.msra.mxu0 0.0
        %1464 = vmatprep.subr.mxu0 0.0
        %1465 = vmatpush1.xpose.msra.mxu0 0.0
        %1466 = vmatprep.subr.mxu0 0.0
        %1467 = vmatpush1.xpose.msra.mxu0 0.0
        %1468 = vmatprep.subr.mxu0 0.0
        %1469 = vmatpush1.xpose.msra.mxu0 0.0
        %1470 = vmatprep.subr.mxu0 0.0
        %1471 = vmatpush1.xpose.msra.mxu0 0.0
        %1472 = vmatprep.subr.mxu0 0.0
        %1473 = vmatpush1.xpose.msra.mxu0 0.0
        %1474 = vmatprep.subr.mxu0 0.0
        %1475 = vmatpush1.xpose.msra.mxu0 0.0
        %1476 = vmatprep.subr.mxu0 0.0
        %1477 = vmatpush1.xpose.msra.mxu0 0.0
        %1478 = vmatprep.subr.mxu0 0.0
        %1479 = vmatpush1.xpose.msra.mxu0 0.0
        %1480 = vmatprep.subr.mxu0 0.0
        %1481 = vmatpush1.xpose.msra.mxu0 0.0
        %1482 = vmatprep.mubr.f32.mxu0 0.0
        %1483 = vmatmul.mubr.f32.gmra.mrb[0].mxu0 %v1414
        %v1484 = vpop.f32.mrb[0].mxu0
        %v1485 = vadd.f32 0.0, %v1484
        %v1486 = vpop.f32.mrb[0].mxu0
        %1487 = vdwg.mxu0
        %v1488 = vmul.f32 %v1485, 0.35355338
        %v1489 = vsel %vm697, %v1488, -inf
        %1490 = vmax.xlane.f32.xlu0 %v1489
        %v1491 = vpop.xlane.xlu0 %1490
        %v1492 = vsub.f32 %v1488, %v1491
        %v1493 = vmul.f32 %v1492, 1.442695
        %v1494 = vpow.pop %v1493
        %v1495 = vsel %vm697, %v1494, 0.0
        %1496 = vadd.xlane.f32.xlu0 %v1495
        %v1497 = vpop.xlane.xlu0 %1496
        %v1498 = vrcp.pop %v1497
        %v1499 = vmul.f32 %v1494, %v1498
        %1500 = vrot.lane.b32.xlu0 %v687, 104
        %v1501 = vpop.permute.xlu0 %1500
        %v1504 = vsel %vm697, %v1499, 0
        %1506 = vmatprep.subr.mxu0 0.0
        %1507 = vmatpush1.msra.mxu0 %v1501
        %1508 = vmatprep.subr.mxu0 0.0
        %1509 = vmatpush1.msra.mxu0 0.0
        %1510 = vmatprep.subr.mxu0 0.0
        %1511 = vmatpush1.msra.mxu0 0.0
        %1512 = vmatprep.subr.mxu0 0.0
        %1513 = vmatpush1.msra.mxu0 0.0
        %1514 = vmatprep.subr.mxu0 0.0
        %1515 = vmatpush1.msra.mxu0 0.0
        %1516 = vmatprep.subr.mxu0 0.0
        %1517 = vmatpush1.msra.mxu0 0.0
        %1518 = vmatprep.subr.mxu0 0.0
        %1519 = vmatpush1.msra.mxu0 0.0
        %1520 = vmatprep.subr.mxu0 0.0
        %1521 = vmatpush1.msra.mxu0 0.0
        %1522 = vmatprep.subr.mxu0 0.0
        %1523 = vmatpush1.msra.mxu0 0.0
        %1524 = vmatprep.subr.mxu0 0.0
        %1525 = vmatpush1.msra.mxu0 0.0
        %1526 = vmatprep.subr.mxu0 0.0
        %1527 = vmatpush1.msra.mxu0 0.0
        %1528 = vmatprep.subr.mxu0 0.0
        %1529 = vmatpush1.msra.mxu0 0.0
        %1530 = vmatprep.subr.mxu0 0.0
        %1531 = vmatpush1.msra.mxu0 0.0
        %1532 = vmatprep.subr.mxu0 0.0
        %1533 = vmatpush1.msra.mxu0 0.0
        %1534 = vmatprep.subr.mxu0 0.0
        %1535 = vmatpush1.msra.mxu0 0.0
        %1536 = vmatprep.subr.mxu0 0.0
        %1537 = vmatpush1.msra.mxu0 0.0
        %1538 = vmatprep.subr.mxu0 0.0
        %1539 = vmatpush1.msra.mxu0 0.0
        %1540 = vmatprep.subr.mxu0 0.0
        %1541 = vmatpush1.msra.mxu0 0.0
        %1542 = vmatprep.subr.mxu0 0.0
        %1543 = vmatpush1.msra.mxu0 0.0
        %1544 = vmatprep.subr.mxu0 0.0
        %1545 = vmatpush1.msra.mxu0 0.0
        %1546 = vmatprep.subr.mxu0 0.0
        %1547 = vmatpush1.msra.mxu0 0.0
        %1548 = vmatprep.subr.mxu0 0.0
        %1549 = vmatpush1.msra.mxu0 0.0
        %1550 = vmatprep.subr.mxu0 0.0
        %1551 = vmatpush1.msra.mxu0 0.0
        %1552 = vmatprep.subr.mxu0 0.0
        %1553 = vmatpush1.msra.mxu0 0.0
        %1554 = vmatprep.subr.mxu0 0.0
        %1555 = vmatpush1.msra.mxu0 0.0
        %1556 = vmatprep.subr.mxu0 0.0
        %1557 = vmatpush1.msra.mxu0 0.0
        %1558 = vmatprep.subr.mxu0 0.0
        %1559 = vmatpush1.msra.mxu0 0.0
        %1560 = vmatprep.subr.mxu0 0.0
        %1561 = vmatpush1.msra.mxu0 0.0
        %1562 = vmatprep.subr.mxu0 0.0
        %1563 = vmatpush1.msra.mxu0 0.0
        %1564 = vmatprep.subr.mxu0 0.0
        %1565 = vmatpush1.msra.mxu0 0.0
        %1566 = vmatprep.subr.mxu0 0.0
        %1567 = vmatpush1.msra.mxu0 0.0
        %1568 = vmatprep.subr.mxu0 0.0
        %1569 = vmatpush1.msra.mxu0 0.0
        %1570 = vmatprep.mubr.f32.mxu0 0.0
        %1571 = vmatmul.mubr.f32.gmra.mrb[0].mxu0 %v1504
        %v1572 = vpop.f32.mrb[0].mxu0
        %v1573 = vadd.f32 0.0, %v1572
        %v1574 = vpop.f32.mrb[0].mxu0
        %1575 = vdwg.mxu0
        %v1577 = vsel %vm697, %v1573, 0
        %1579 = vmatprep.subr.mxu0 0.0
        %1580 = vmatpush1.msra.mxu0 %v693
        %1581 = vmatprep.subr.mxu0 0.0
        %1582 = vmatpush1.msra.mxu0 0.0
        %1583 = vmatprep.subr.mxu0 0.0
        %1584 = vmatpush1.msra.mxu0 0.0
        %1585 = vmatprep.subr.mxu0 0.0
        %1586 = vmatpush1.msra.mxu0 0.0
        %1587 = vmatprep.subr.mxu0 0.0
        %1588 = vmatpush1.msra.mxu0 0.0
        %1589 = vmatprep.subr.mxu0 0.0
        %1590 = vmatpush1.msra.mxu0 0.0
        %1591 = vmatprep.subr.mxu0 0.0
        %1592 = vmatpush1.msra.mxu0 0.0
        %1593 = vmatprep.subr.mxu0 0.0
        %1594 = vmatpush1.msra.mxu0 0.0
        %1595 = vmatprep.subr.mxu0 0.0
        %1596 = vmatpush1.msra.mxu0 0.0
        %1597 = vmatprep.subr.mxu0 0.0
        %1598 = vmatpush1.msra.mxu0 0.0
        %1599 = vmatprep.subr.mxu0 0.0
        %1600 = vmatpush1.msra.mxu0 0.0
        %1601 = vmatprep.subr.mxu0 0.0
        %1602 = vmatpush1.msra.mxu0 0.0
        %1603 = vmatprep.subr.mxu0 0.0
        %1604 = vmatpush1.msra.mxu0 0.0
        %1605 = vmatprep.subr.mxu0 0.0
        %1606 = vmatpush1.msra.mxu0 0.0
        %1607 = vmatprep.subr.mxu0 0.0
        %1608 = vmatpush1.msra.mxu0 0.0
        %1609 = vmatprep.subr.mxu0 0.0
        %1610 = vmatpush1.msra.mxu0 0.0
        %1611 = vmatprep.subr.mxu0 0.0
        %1612 = vmatpush1.msra.mxu0 0.0
        %1613 = vmatprep.subr.mxu0 0.0
        %1614 = vmatpush1.msra.mxu0 0.0
        %1615 = vmatprep.subr.mxu0 0.0
        %1616 = vmatpush1.msra.mxu0 0.0
        %1617 = vmatprep.subr.mxu0 0.0
        %1618 = vmatpush1.msra.mxu0 0.0
        %1619 = vmatprep.subr.mxu0 0.0
        %1620 = vmatpush1.msra.mxu0 0.0
        %1621 = vmatprep.subr.mxu0 0.0
        %1622 = vmatpush1.msra.mxu0 0.0
        %1623 = vmatprep.subr.mxu0 0.0
        %1624 = vmatpush1.msra.mxu0 0.0
        %1625 = vmatprep.subr.mxu0 0.0
        %1626 = vmatpush1.msra.mxu0 0.0
        %1627 = vmatprep.subr.mxu0 0.0
        %1628 = vmatpush1.msra.mxu0 0.0
        %1629 = vmatprep.subr.mxu0 0.0
        %1630 = vmatpush1.msra.mxu0 0.0
        %1631 = vmatprep.subr.mxu0 0.0
        %1632 = vmatpush1.msra.mxu0 0.0
        %1633 = vmatprep.subr.mxu0 0.0
        %1634 = vmatpush1.msra.mxu0 0.0
        %1635 = vmatprep.subr.mxu0 0.0
        %1636 = vmatpush1.msra.mxu0 0.0
        %1637 = vmatprep.subr.mxu0 0.0
        %1638 = vmatpush1.msra.mxu0 0.0
        %1639 = vmatprep.subr.mxu0 0.0
        %1640 = vmatpush1.msra.mxu0 0.0
        %1641 = vmatprep.subr.mxu0 0.0
        %1642 = vmatpush1.msra.mxu0 0.0
        %1643 = vmatprep.mubr.f32.mxu0 0.0
        %1644 = vmatmul.mubr.f32.gmra.mrb[0].mxu0 %v1577
        %v1645 = vpop.f32.mrb[0].mxu0
        %v1646 = vadd.f32 0.0, %v1645
        %v1647 = vpop.f32.mrb[0].mxu0
        %1648 = vdwg.mxu0
        %v1649 = vadd.f32 %v1409, %v1646
        %v1650 = vadd.f32 %v517, %v1649
        %v1651 = vld [vmem:[%s8] sm:$0x1]
        %v1653 = vlaneseq
        %v1654 = vshrl.u32 %v1653, 7
        %v1655 = vsub.s32 0, %v1654
        %v1656 = vrot.slane %v1651, %v1655
        %v1658 = vadd.f32 %v1650, %v1656
        %v1659 = vsel %vm532, %v1658, 0.0
        %1660 = vadd.xlane.f32.xlu0 %v1659
        %v1661 = vpop.xlane.xlu0 %1660
        %v1662 = vrcp.pop 32.0
        %v1663 = vmul.f32 %v1661, %v1662
        %v1664 = vsub.f32 %v1658, %v1663
        %v1665 = vmul.f32 %v1664, %v1664
        %v1666 = vsel %vm532, %v1665, 0.0
        %1667 = vadd.xlane.f32.xlu0 %v1666
        %v1668 = vpop.xlane.xlu0 %1667
        %v1669 = vmul.f32 %v1668, %v1662
        %v1670 = vadd.f32 %v1669, 1e-05
        %v1671 = vrsqrt.pop %v1670
        %v1672 = vmul.f32 %v1664, %v1671
        %v1673 = vld [vmem:[%s9] sm:$0x1]
        %v1675 = vlaneseq
        %v1676 = vshrl.u32 %v1675, 7
        %v1677 = vsub.s32 0, %v1676
        %v1678 = vrot.slane %v1673, %v1677
        %v1680 = vmul.f32 %v1672, %v1678
        %v1681 = vld [vmem:[%s10] sm:$0x1]
        %v1683 = vlaneseq
        %v1684 = vshrl.u32 %v1683, 7
        %v1685 = vsub.s32 0, %v1684
        %v1686 = vrot.slane %v1681, %v1685
        %v1688 = vadd.f32 %v1680, %v1686
        %1689 = vst.msk [vmem:[%s516] sm:$0xff] %vm532, %v1688
        %s1690 = sand.u32 %s287, 1
        %s1691 = scalar_lea.sflag [#allocation4], %s1690
        %s1692 = sand.u32 %s287, 1
        %s1693 = smul.addr %s1692, 8
        %s1694 = scalar_lea.vmem [#allocation13], %s1693
        // Predicated region
        $region89: #{tpu_custom_call.1} parent=63 // pred_check
          %p1695 = pneg %p297
        $region90: #{tpu_custom_call.1} parent=63 // pred_check_branch
          %1697 = sbr.rel (%p1695) target = $region92
        $region91: #{tpu_custom_call.1} parent=63 // pred_region
          %s1699 = ssub.s32 128, 128
          %1700 = vsyncadd %s1691, %s1699
          %s1701 = smul.addr %s33, 128
          %s1702 = scalar_lea.hbm %s11, %s1701
          %s1704 = sshll.u32 %s1694, 4
          %s1705 = int_to_ptr.vmem [resolvable:$true] %s1704
          %1707 = dma.vmem_to_hbm [thread:$0]  %s1705, 128, %s1702, %s1691
        $region92: #{tpu_custom_call.1} parent=63 // pred_fallthru
          _
      $region64: #{tpu_custom_call.1} parent=5 // pred_fallthru
        _
      %p1708 = scmp.le.s32.totalorder 2, %s28
      // Predicated region
      $region93: #{tpu_custom_call.1} parent=5 // pred_check
        %p1709 = pneg %p1708
      $region94: #{tpu_custom_call.1} parent=5 // pred_check_branch
        %1711 = sbr.rel (%p1709) target = $region96
      $region95: #{tpu_custom_call.1} parent=5 // pred_region
        %s1712 = ssub.s32 %s28, 2
        // Predicated region
        $region97: #{tpu_custom_call.1} parent=95 // pred_check
          %p1713 = pneg %p303
        $region98: #{tpu_custom_call.1} parent=95 // pred_check_branch
          %1715 = sbr.rel (%p1713) target = $region100
        $region99: #{tpu_custom_call.1} parent=95 // pred_region
          %s1716 = sand.u32 %s288, 1
          %s1717 = scalar_lea.sflag [#allocation4], %s1716
          %s1718 = sand.u32 %s288, 1
          %s1719 = smul.addr %s1718, 8
          %s1720 = scalar_lea.vmem [#allocation13], %s1719
          %1721 = dma.done %s1717, 128
        $region100: #{tpu_custom_call.1} parent=95 // pred_fallthru
          _
      $region96: #{tpu_custom_call.1} parent=5 // pred_fallthru
        _
    $region6: #{tpu_custom_call.1} parent=1 // loop_footer
      %s32 = sadd.s32 1, %s28
    $region7: #{tpu_custom_call.1} parent=1 // loop_footer_branch
      %27 = sbr.rel target = $region3
    $region8: #{tpu_custom_call.1} parent=1 // loop_exit
      _
    %1722 = vsyncpa [#allocation3], 1
    %s1723 = scalar_lea.sflag [#allocation3], 1
    %1724 = vsyncpa %s1723, 1
    %1725 = vsyncpa [#allocation6], 1
    %s1726 = scalar_lea.sflag [#allocation6], 1
    %1727 = vsyncpa %s1726, 1
    %1728 = vsyncpa [#allocation9], 1
    %1729 = vsyncpa [#allocation12], 1
    %1730 = vsyncpa [#allocation4], 1
    %s1731 = scalar_lea.sflag [#allocation4], 1
    %1732 = vsyncpa %s1731, 1

</llo_original>
